<compile_context>
chip_gen: v5e
topology: v5e:2x2
jax: 0.10.0
libtpu: 0.0.40
codegen_flags: <defaults>
</compile_context>

<pallas_src>
import functools

import numpy as np
import jax
import jax.numpy as jnp
from jax.experimental import pallas as pl
from jax.experimental.pallas import tpu as pltpu


def _round_up(x, m):
    return ((x + m - 1) // m) * m


def _tpu_vmem_bytes():
    try:
        return int(pltpu.get_tpu_info().vmem_capacity_bytes)
    except Exception:
        return 64 << 20            # conservative (v7x-sized) fallback


_VMEM_CAP = _tpu_vmem_bytes()
_BIG_VMEM = _VMEM_CAP >= (100 << 20)
# v5e/v6e (128 MiB VMEM): 1024-wide tiles push the big FCs to the MXU roofline.
# v7x (64 MiB VMEM, 3.2 TB/s HBM): 512-wide tiles already reach roofline and
# keep the double-buffered footprint comfortably under the physical limit.
_TGT_M = 1024 if _BIG_VMEM else 512
_TGT_N = 1024 if _BIG_VMEM else 512
_TGT_K = 1024 if _BIG_VMEM else 512
_VMEM_LIMIT = int(min(0.75 * _VMEM_CAP, 100 << 20))


def _cparams(sem):
    return pltpu.CompilerParams(dimension_semantics=sem,
                                vmem_limit_bytes=_VMEM_LIMIT)


def _pick_tile(dim_padded, target):
    """Largest multiple of 128 <= target that divides dim_padded (>= 128)."""
    best = 128
    cand = 256
    while cand <= min(dim_padded, target):
        if dim_padded % cand == 0:
            best = cand
        cand += 128
    return best


def _pad_w(w):
    K, N = w.shape
    Kp, Np = _round_up(K, 128), _round_up(N, 128)
    return jnp.pad(w, ((0, Kp - K), (0, Np - N))).astype(jnp.bfloat16)


def _pad_b(b):
    N = b.shape[0]
    return jnp.pad(b, (0, _round_up(N, 128) - N)).astype(jnp.float32).reshape(1, -1)


def _fit_rows(a, rows):
    r = a.shape[0]
    if r == rows:
        return a
    if r < rows:
        return jnp.pad(a, ((0, rows - r), (0, 0)))
    return a[:rows]


# ---------------------------------------------------------------------------
# Kernel 1: tiled linear  y = maybe_relu(x @ w + b)   (bf16 MXU, f32 accum)
# ---------------------------------------------------------------------------
def _linear_kernel(x_ref, w_ref, b_ref, o_ref, acc_ref, *, relu):
    k = pl.program_id(2)

    @pl.when(k == 0)
    def _init():
        acc_ref[...] = jnp.zeros_like(acc_ref)

    acc_ref[...] += jnp.dot(x_ref[...], w_ref[...],
                            preferred_element_type=jnp.float32)

    @pl.when(k == pl.num_programs(2) - 1)
    def _finalize():
        out = acc_ref[...] + b_ref[...]
        if relu:
            out = jnp.maximum(out, 0.0)
        o_ref[...] = out.astype(o_ref.dtype)


def pallas_linear(x, packed, *, relu=True, out_dtype=jnp.bfloat16):
    """maybe_relu(x @ w + b). Weights arrive pre-padded bf16; output stays at
    the padded (Mp, Np) shape in `out_dtype` so the next kernel consumes it
    directly (no slice / re-pad / re-cast HBM passes between layers)."""
    w, b = packed["w"], packed["b"]
    Kp, Np = w.shape
    M, Kx = x.shape
    assert Kx <= Kp
    bm = min(_TGT_M, _round_up(M, 128))
    bn = _pick_tile(Np, _TGT_N)
    bk = _pick_tile(Kp, _TGT_K)
    Mp = _round_up(M, bm)

    xp = x.astype(jnp.bfloat16)
    if (Mp - M) or (Kp - Kx):
        xp = jnp.pad(xp, ((0, Mp - M), (0, Kp - Kx)))

    return pl.pallas_call(
        functools.partial(_linear_kernel, relu=relu),
        grid=(Mp // bm, Np // bn, Kp // bk),
        in_specs=[
            pl.BlockSpec((bm, bk), lambda i, j, k: (i, k)),
            pl.BlockSpec((bk, bn), lambda i, j, k: (k, j)),
            pl.BlockSpec((1, bn), lambda i, j, k: (0, j)),
        ],
        out_specs=pl.BlockSpec((bm, bn), lambda i, j, k: (i, j)),
        out_shape=jax.ShapeDtypeStruct((Mp, Np), out_dtype),
        scratch_shapes=[pltpu.VMEM((bm, bn), jnp.float32)],
        compiler_params=_cparams(("parallel", "parallel", "arbitrary")),
    )(xp, w, b)


# ---------------------------------------------------------------------------
# Kernel 2: fused FC+ReLU + classifier, tiled over (M, N, K):
#   feat   = relu(x @ w + b)         (feat N-dimension tiled -> small residency)
#   logits = feat @ wo + bo          (accumulated across the N tiles)
# ---------------------------------------------------------------------------
def _fc_cls_kernel(x_ref, w_ref, b_ref, wo_ref, bo_ref, feat_ref, log_ref,
                   acc_ref, lacc_ref):
    j, k = pl.program_id(1), pl.program_id(2)
    nj, nk = pl.num_programs(1), pl.num_programs(2)

    @pl.when(jnp.logical_and(j == 0, k == 0))
    def _init_logits():
        lacc_ref[...] = jnp.zeros_like(lacc_ref)

    @pl.when(k == 0)
    def _init_feat():
        acc_ref[...] = jnp.zeros_like(acc_ref)

    acc_ref[...] += jnp.dot(x_ref[...], w_ref[...],
                            preferred_element_type=jnp.float32)

    @pl.when(k == nk - 1)
    def _feat_done():
        feat = jnp.maximum(acc_ref[...] + b_ref[...], 0.0)
        feat_ref[...] = feat.astype(feat_ref.dtype)
        lacc_ref[...] += jnp.dot(feat.astype(jnp.bfloat16), wo_ref[...],
                                 preferred_element_type=jnp.float32)

    @pl.when(jnp.logical_and(j == nj - 1, k == nk - 1))
    def _logits_done():
        log_ref[...] = (lacc_ref[...] + bo_ref[...]).astype(log_ref.dtype)


def pallas_fc_relu_plus_classifier(x, packed_fc, packed_cls):
    w2, b2 = packed_fc["w"], packed_fc["b"]      # (Kp, Np), (1, Np)
    wo, bo = packed_cls["w"], packed_cls["b"]    # (Np, Cp), (1, Cp)
    Kp, Np = w2.shape
    assert wo.shape[0] == Np
    Cp = wo.shape[1]
    M, Kx = x.shape
    assert Kx <= Kp
    # bm=128 when M is small keeps >=2 parallel row tiles for megacore sharding.
    bm = 128 if M <= 256 else min(_TGT_M, _round_up(M, 128))
    bn = _pick_tile(Np, _TGT_N)
    bk = _pick_tile(Kp, _TGT_K)
    Mp = _round_up(M, bm)

    xp = x.astype(jnp.bfloat16)
    if (Mp - M) or (Kp - Kx):
        xp = jnp.pad(xp, ((0, Mp - M), (0, Kp - Kx)))

    feat, logits = pl.pallas_call(
        _fc_cls_kernel,
        grid=(Mp // bm, Np // bn, Kp // bk),
        in_specs=[
            pl.BlockSpec((bm, bk), lambda i, j, k: (i, k)),
            pl.BlockSpec((bk, bn), lambda i, j, k: (k, j)),
            pl.BlockSpec((1, bn), lambda i, j, k: (0, j)),
            pl.BlockSpec((bn, Cp), lambda i, j, k: (j, 0)),
            pl.BlockSpec((1, Cp), lambda i, j, k: (0, 0)),
        ],
        out_specs=[
            pl.BlockSpec((bm, bn), lambda i, j, k: (i, j)),
            pl.BlockSpec((bm, Cp), lambda i, j, k: (i, 0)),
        ],
        out_shape=[jax.ShapeDtypeStruct((Mp, Np), jnp.bfloat16),
                   jax.ShapeDtypeStruct((Mp, Cp), jnp.float32)],
        scratch_shapes=[pltpu.VMEM((bm, bn), jnp.float32),
                        pltpu.VMEM((bm, Cp), jnp.float32)],
        compiler_params=_cparams(("parallel", "arbitrary", "arbitrary")),
    )(xp, w2, b2, wo, bo)
    return feat, logits


# ---------------------------------------------------------------------------
# Kernel 3: fused relation head, tiled over (R, Fh, K):
#   h      = relu(roi[s] @ Wp_s + roi[o] @ Wp_o + bp)   (pair FC, split K)
#   h      = h * union_features                          (vision gating)
#   logits = h @ Wr + br                                 (accumulated over Fh)
# ---------------------------------------------------------------------------
def _relation_kernel(s_ref, o_ref, u_ref, wps_ref, wpo_ref, bp_ref,
                     wr_ref, brel_ref, out_ref, hacc_ref, lacc_ref):
    j, k = pl.program_id(1), pl.program_id(2)
    nj, nk = pl.num_programs(1), pl.num_programs(2)

    @pl.when(jnp.logical_and(j == 0, k == 0))
    def _init_logits():
        lacc_ref[...] = jnp.zeros_like(lacc_ref)

    @pl.when(k == 0)
    def _init_h():
        hacc_ref[...] = jnp.zeros_like(hacc_ref)

    hacc_ref[...] += jnp.dot(s_ref[...], wps_ref[...],
                             preferred_element_type=jnp.float32)
    hacc_ref[...] += jnp.dot(o_ref[...], wpo_ref[...],
                             preferred_element_type=jnp.float32)

    @pl.when(k == nk - 1)
    def _h_done():
        h = jnp.maximum(hacc_ref[...] + bp_ref[...], 0.0)
        h = h * u_ref[...].astype(jnp.float32)
        lacc_ref[...] += jnp.dot(h.astype(jnp.bfloat16), wr_ref[...],
                                 preferred_element_type=jnp.float32)

    @pl.when(jnp.logical_and(j == nj - 1, k == nk - 1))
    def _logits_done():
        out_ref[...] = (lacc_ref[...] + brel_ref[...]).astype(out_ref.dtype)


def pallas_relation_head(roi_s, roi_o, union, packed):
    wps, wpo = packed["pair_ws"], packed["pair_wo"]   # (Kp, Fhp)
    bp = packed["pair_b"]                             # (1, Fhp)
    wr, brel = packed["rel_w"], packed["rel_b"]       # (Fhp, Cp), (1, Cp)
    Kp, Fhp = wps.shape
    Cp = wr.shape[1]
    R = roi_s.shape[0]
    br_ = 128 if R <= 256 else min(_TGT_M, _round_up(R, 128))
    bf = _pick_tile(Fhp, _TGT_N)
    bk = _pick_tile(Kp, _TGT_K)
    Rp = _round_up(R, br_)

    def prep(a, width):
        a = a.astype(jnp.bfloat16)
        if a.shape[1] < width:
            a = jnp.pad(a, ((0, 0), (0, width - a.shape[1])))
        return _fit_rows(a, Rp)

    s_p, o_p = prep(roi_s, Kp), prep(roi_o, Kp)
    u_p = prep(union, Fhp)

    return pl.pallas_call(
        _relation_kernel,
        grid=(Rp // br_, Fhp // bf, Kp // bk),
        in_specs=[
            pl.BlockSpec((br_, bk), lambda i, j, k: (i, k)),     # roi[subj]
            pl.BlockSpec((br_, bk), lambda i, j, k: (i, k)),     # roi[obj]
            pl.BlockSpec((br_, bf), lambda i, j, k: (i, j)),     # union gate
            pl.BlockSpec((bk, bf), lambda i, j, k: (k, j)),      # W_pair subj
            pl.BlockSpec((bk, bf), lambda i, j, k: (k, j)),      # W_pair obj
            pl.BlockSpec((1, bf), lambda i, j, k: (0, j)),
            pl.BlockSpec((bf, Cp), lambda i, j, k: (j, 0)),
            pl.BlockSpec((1, Cp), lambda i, j, k: (0, 0)),
        ],
        out_specs=pl.BlockSpec((br_, Cp), lambda i, j, k: (i, 0)),
        out_shape=jax.ShapeDtypeStruct((Rp, Cp), jnp.float32),
        scratch_shapes=[pltpu.VMEM((br_, bf), jnp.float32),
                        pltpu.VMEM((br_, Cp), jnp.float32)],
        compiler_params=_cparams(("parallel", "arbitrary", "arbitrary")),
    )(s_p, o_p, u_p, wps, wpo, bp, wr, brel)


# ---------------------------------------------------------------------------
# Kernel 4: feature_reducer Conv2d(2*conv_dim -> conv_dim, k=3, s=1, p=1)+ReLU
# One grid step per batch element: the padded image is DMA'd once (no 3x
# overlapping row reads); a static in-kernel row-tile loop builds a
# (rows*W, 9*Cin) bf16 slab (all 9 taps collapsed) and does one MXU push per
# row tile with M >= 128.
# ---------------------------------------------------------------------------
def _conv3x3_kernel(x_ref, w_ref, b_ref, o_ref, *, rt, n_rt):
    Wd = o_ref.shape[2]
    cout = o_ref.shape[3]
    cin = x_ref.shape[3]
    for t in range(n_rt):                              # static row-tile loop
        r0 = t * rt
        win = x_ref[0, r0:r0 + rt + 2, :, :]           # (rt+2, W+2, Cin)
        taps = []
        for ky in range(3):
            for kx in range(3):
                taps.append(win[ky:ky + rt, kx:kx + Wd, :])
        slab = jnp.concatenate(taps, axis=-1).reshape(rt * Wd, 9 * cin)
        acc = jnp.dot(slab, w_ref[...], preferred_element_type=jnp.float32)
        out = jnp.maximum(acc + b_ref[...], 0.0)
        o_ref[0, r0:r0 + rt, :, :] = out.reshape(rt, Wd, cout).astype(o_ref.dtype)


def feature_reducer(x_nhwc, w_packed, b_packed):
    """3x3/s1/p1 conv + ReLU, bf16 MXU operands, f32 accumulation.
    Returns the channel-padded (Cout_p) / row-padded (Hp) bf16 map; downstream
    consumers never slice it (fc1/ufc weights are channel-padded to match)."""
    B, H, W, Cin = x_nhwc.shape
    Cout_p = w_packed.shape[1]
    rt = min(128, max(8, -(-128 // W)))    # rows per MXU push: aim for M >= 128
    Hp = _round_up(H, rt)
    n_rt = Hp // rt
    xpad = jnp.pad(x_nhwc, ((0, 0), (1, 1 + Hp - H), (1, 1), (0, 0))
                   ).astype(jnp.bfloat16)

    return pl.pallas_call(
        functools.partial(_conv3x3_kernel, rt=rt, n_rt=n_rt),
        grid=(B,),
        in_specs=[
            pl.BlockSpec((1, Hp + 2, W + 2, Cin), lambda b: (b, 0, 0, 0)),
            pl.BlockSpec(w_packed.shape, lambda b: (0, 0)),
            pl.BlockSpec(b_packed.shape, lambda b: (0, 0)),
        ],
        out_specs=pl.BlockSpec((1, Hp, W, Cout_p), lambda b: (b, 0, 0, 0)),
        out_shape=jax.ShapeDtypeStruct((B, Hp, W, Cout_p), jnp.bfloat16),
        compiler_params=_cparams(("parallel",)),
    )(xpad, w_packed, b_packed)


# ---------------------------------------------------------------------------
# JAX glue (layout / gather / pairing — data-dependent, kept outside Pallas)
# ---------------------------------------------------------------------------
def roi_pool(feat_nhwc, boxes5, scale, P, Hf, Wf):
    """Simplified ROI pooling (nearest-neighbour PxP sampling).
    boxes5: (N, 5) = [batch_idx, x1, y1, x2, y2] in image coordinates.
    # TODO(synk): detectron2 ROIAlign uses bilinear sampling with a sampling
    # ratio / 0.5-pixel alignment; a Pallas scalar-prefetch DMA gather of only
    # the P*P sampled rows per box would also avoid re-reading the map."""
    def one(box):
        b = box[0].astype(jnp.int32)
        x1, y1 = box[1] * scale, box[2] * scale
        x2 = jnp.maximum(box[3] * scale, x1)
        y2 = jnp.maximum(box[4] * scale, y1)
        xs = x1 + (jnp.arange(P, dtype=jnp.float32) + 0.5) * (x2 - x1) / P
        ys = y1 + (jnp.arange(P, dtype=jnp.float32) + 0.5) * (y2 - y1) / P
        xi = jnp.clip(jnp.floor(xs).astype(jnp.int32), 0, Wf - 1)
        yi = jnp.clip(jnp.floor(ys).astype(jnp.int32), 0, Hf - 1)
        fm = jnp.take(feat_nhwc, b, axis=0)
        rows = jnp.take(fm, yi, axis=0)
        return jnp.take(rows, xi, axis=1)

    return jax.vmap(one)(boxes5)


def prepare_test_pairs(num_boxes_per_image):
    """All ordered (subject, object) pairs, i != j, with per-image offsets."""
    pairs, offset = [], 0
    for n in num_boxes_per_image:
        idx = np.arange(n)
        s, o = np.meshgrid(idx, idx, indexing="ij")
        m = s != o
        pairs.append(np.stack([s[m], o[m]], axis=-1) + offset)
        offset += n
    return jnp.asarray(np.concatenate(pairs, axis=0), dtype=jnp.int32)


# ---------------------------------------------------------------------------
# One-time weight packing (pad to 128 multiples + bf16 cast, done ONCE)
# ---------------------------------------------------------------------------
def pack_params(params, conv_dim, feat_dim, pooler_res):
    cin = params["conv_w"].shape[2]
    cout = params["conv_w"].shape[3]
    cout_p = _round_up(cout, 128)
    conv_w = jnp.pad(params["conv_w"],
                     ((0, 0), (0, 0), (0, 0), (0, cout_p - cout)))
    conv_w = conv_w.reshape(9 * cin, cout_p).astype(jnp.bfloat16)
    conv_b = _pad_b(params["conv_b"])

    def pack_pooled(wname, bname):
        # NOTE: flatten order here is NHWC (P, P, C); detectron2 checkpoints
        # flatten NCHW and would need a row permutation before packing.
        w4 = params[wname].reshape(pooler_res, pooler_res, cout, feat_dim)
        w4 = jnp.pad(w4, ((0, 0), (0, 0), (0, cout_p - cout), (0, 0)))
        w2 = w4.reshape(pooler_res * pooler_res * cout_p, feat_dim)
        return {"w": _pad_w(w2), "b": _pad_b(params[bname]), "n": feat_dim}

    return {
        "conv_w": conv_w, "conv_b": conv_b,
        "fc1": pack_pooled("fc1_w", "fc1_b"),
        "ufc": pack_pooled("ufc_w", "ufc_b"),
        "fc2": {"w": _pad_w(params["fc2_w"]), "b": _pad_b(params["fc2_b"]),
                "n": feat_dim},
        "obj": {"w": _pad_w(params["obj_w"]), "b": _pad_b(params["obj_b"]),
                "n": params["obj_w"].shape[1]},
        "pair_ws": _pad_w(params["pair_w"][:feat_dim]),
        "pair_wo": _pad_w(params["pair_w"][feat_dim:]),
        "pair_b": _pad_b(params["pair_b"]),
        "rel_w": _pad_w(params["rel_w"]),
        "rel_b": _pad_b(params["rel_b"]),
        "rel_n": params["rel_w"].shape[1],
    }


# ---------------------------------------------------------------------------
# End-to-end forward (eval mode)
# ---------------------------------------------------------------------------
def scenegraph_seg_head_end2end_forward(features_nchw, boxes_per_image, packed, cfg):
    """
    features_nchw  : {'vgg_conv': (B, 2*conv_dim, H, W)}  (PyTorch NCHW input)
    boxes_per_image: list of (ni, 4) boxes in image coords [x1,y1,x2,y2]
    Returns (roi_features, (refine_logits, relation_logits, rel_pair_idxs), {})
    """
    P = cfg["pooler_resolution"]
    scale = cfg["pooler_scale"]

    # --- feature_reducer (VGG branch): Conv3x3 + ReLU ------------------------
    x = jnp.transpose(features_nchw["vgg_conv"], (0, 2, 3, 1))   # NCHW -> NHWC
    B, H, W, _ = x.shape
    feat = feature_reducer(x, packed["conv_w"], packed["conv_b"])
    cout_p = feat.shape[-1]

    # TODO(synk): mask_refinement / segmentation_step branch (mask predictor +
    # segmentation losses) is not implemented; mask_losses = {}.

    # --- boxes & relation pairs (prepare_test_pairs, eval path) --------------
    num_per_img = [b.shape[0] for b in boxes_per_image]
    batch_idx = jnp.concatenate(
        [jnp.full((n,), i, dtype=jnp.float32) for i, n in enumerate(num_per_img)])
    cat_boxes = jnp.concatenate(boxes_per_image, axis=0)
    boxes5 = jnp.concatenate([batch_idx[:, None], cat_boxes], axis=1)
    rel_pair_idxs = prepare_test_pairs(num_per_img)
    N = cat_boxes.shape[0]
    R = rel_pair_idxs.shape[0]

    # --- box_feature_extractor: pool -> FC+ReLU -> FC+ReLU + classifier ------
    pooled = roi_pool(feat, boxes5, scale, P, H, W)               # (N,P,P,Cp)
    pooled_flat = pooled.reshape(N, P * P * cout_p)               # bf16, lane-dense
    h1 = pallas_linear(pooled_flat, packed["fc1"], relu=True)     # bf16, padded
    roi_feat_pad, refine_pad = pallas_fc_relu_plus_classifier(
        h1, packed["fc2"], packed["obj"])
    feat_dim = packed["fc2"]["n"]
    num_obj = packed["obj"]["n"]

    # --- union_feature_extractor: union boxes -> pool -> FC + ReLU -----------
    subj = rel_pair_idxs[:, 0]
    obj = rel_pair_idxs[:, 1]
    b_s = jnp.take(cat_boxes, subj, axis=0)
    b_o = jnp.take(cat_boxes, obj, axis=0)
    union = jnp.concatenate(
        [jnp.minimum(b_s[:, :2], b_o[:, :2]), jnp.maximum(b_s[:, 2:], b_o[:, 2:])],
        axis=1)
    union5 = jnp.concatenate([jnp.take(batch_idx, subj)[:, None], union], axis=1)
    u_pooled = roi_pool(feat, union5, scale, P, H, W).reshape(R, P * P * cout_p)
    union_features = pallas_linear(u_pooled, packed["ufc"], relu=True)  # bf16

    # --- relation head: pair FC (split K) + vision gating + classifier -------
    # TODO(synk): the subject/object row gather stays in XLA (jnp.take of the
    # padded bf16 roi features); an in-kernel scalar-prefetch DMA gather would
    # remove these two (R, F) materializations.
    roi_s = jnp.take(roi_feat_pad, subj, axis=0)
    roi_o = jnp.take(roi_feat_pad, obj, axis=0)
    rel_pad = pallas_relation_head(roi_s, roi_o, union_features, packed)

    roi_features = roi_feat_pad[:N, :feat_dim].astype(jnp.float32)
    refine_logits = refine_pad[:N, :num_obj]
    relation_logits = rel_pad[:R, :packed["rel_n"]]

    # TODO(synk): post_processor (Instances construction / sorting) and the
    # training-mode relsampling + loss_evaluator paths are not translatable.
    return roi_features, (refine_logits, relation_logits, rel_pair_idxs), {}


# ---------------------------------------------------------------------------
# Deterministic parameter construction + demo run
# ---------------------------------------------------------------------------
def make_params(key, conv_dim, feat_dim, pooler_res, num_obj_cls, num_rel_cls):
    ks = jax.random.split(key, 14)
    s = 0.05
    pool_flat = pooler_res * pooler_res * conv_dim
    return {
        "conv_w": s * jax.random.normal(ks[0], (3, 3, 2 * conv_dim, conv_dim), jnp.float32),
        "conv_b": s * jax.random.normal(ks[1], (conv_dim,), jnp.float32),
        "fc1_w": s * jax.random.normal(ks[2], (pool_flat, feat_dim), jnp.float32),
        "fc1_b": s * jax.random.normal(ks[3], (feat_dim,), jnp.float32),
        "fc2_w": s * jax.random.normal(ks[4], (feat_dim, feat_dim), jnp.float32),
        "fc2_b": s * jax.random.normal(ks[5], (feat_dim,), jnp.float32),
        "ufc_w": s * jax.random.normal(ks[6], (pool_flat, feat_dim), jnp.float32),
        "ufc_b": s * jax.random.normal(ks[7], (feat_dim,), jnp.float32),
        "obj_w": s * jax.random.normal(ks[8], (feat_dim, num_obj_cls), jnp.float32),
        "obj_b": s * jax.random.normal(ks[9], (num_obj_cls,), jnp.float32),
        "pair_w": s * jax.random.normal(ks[10], (2 * feat_dim, feat_dim), jnp.float32),
        "pair_b": s * jax.random.normal(ks[11], (feat_dim,), jnp.float32),
        "rel_w": s * jax.random.normal(ks[12], (feat_dim, num_rel_cls), jnp.float32),
        "rel_b": s * jax.random.normal(ks[13], (num_rel_cls,), jnp.float32),
    }


if __name__ == "__main__":
    key = jax.random.PRNGKey(0)
    k_feat, k_box, k_par = jax.random.split(key, 3)

    B, conv_dim, Hf, Wf = 2, 4, 16, 16          # vgg_conv carries 2*conv_dim channels
    feat_dim, pooler_res = 32, 7
    num_obj_cls, num_rel_cls = 11, 9
    img_size, stride = 64, 4                    # pooler_scale = 1/stride

    cfg = {"pooler_resolution": pooler_res, "pooler_scale": 1.0 / stride}
    raw_params = make_params(k_par, conv_dim, feat_dim, pooler_res,
                             num_obj_cls, num_rel_cls)
    packed = pack_params(raw_params, conv_dim, feat_dim, pooler_res)

    features = {"vgg_conv": jax.random.normal(
        k_feat, (B, 2 * conv_dim, Hf, Wf), jnp.float32)}

    boxes_per_image = []
    kb = jax.random.split(k_box, B)
    for i in range(B):
        xy = jax.random.uniform(kb[i], (3, 2), minval=0.0, maxval=img_size / 2)
        wh = jax.random.uniform(jax.random.fold_in(kb[i], 1), (3, 2),
                                minval=8.0, maxval=img_size / 2)
        boxes_per_image.append(jnp.concatenate([xy, xy + wh], axis=1))

    roi_features, (refine_logits, relation_logits, rel_pair_idxs), losses = \
        scenegraph_seg_head_end2end_forward(features, boxes_per_image, packed, cfg)

    jax.block_until_ready((roi_features, refine_logits, relation_logits))
    assert roi_features.shape == (6, feat_dim)
    assert refine_logits.shape == (6, num_obj_cls)
    assert relation_logits.shape == (rel_pair_idxs.shape[0], num_rel_cls)
    print("KERNEL_OK")
</pallas_src>

<mosaic_0001>
module attributes {stable_mosaic.version = 11 : i64} {
  func.func @_conv3x3_kernel(%arg0: i32, %arg1: memref<1x18x18x8xbf16, #tpu.memory_space<vmem>>, %arg2: memref<72x128xbf16, #tpu.memory_space<vmem>>, %arg3: memref<1x128xf32, #tpu.memory_space<vmem>>, %arg4: memref<1x16x16x128xbf16, #tpu.memory_space<vmem>>) attributes {dimension_semantics = [#tpu.dimension_semantics<parallel>], iteration_bounds = array<i64: 2>, scalar_prefetch = 0 : i64, scratch_operands = 0 : i64, tpu.core_type = #tpu.core_type<tc>, window_params = [{transform_indices = @transform_0, window_bounds = array<i64: 1, 18, 18, 8>}, {pipeline_mode = #tpu.pipeline_mode<synchronous>, transform_indices = @transform_1, window_bounds = array<i64: 72, 128>}, {pipeline_mode = #tpu.pipeline_mode<synchronous>, transform_indices = @transform_2, window_bounds = array<i64: 1, 128>}, {transform_indices = @transform_3, window_bounds = array<i64: 1, 16, 16, 128>}]} {
    %c0 = arith.constant 0 : index
    %c0_0 = arith.constant 0 : index
    %c0_1 = arith.constant 0 : index
    %c0_2 = arith.constant 0 : index
    %0 = vector.load %arg1[%c0, %c0_0, %c0_1, %c0_2] : memref<1x18x18x8xbf16, #tpu.memory_space<vmem>>, vector<1x10x18x8xbf16>
    %1 = vector.shape_cast %0 : vector<1x10x18x8xbf16> to vector<10x18x8xbf16>
    %2 = vector.extract_strided_slice %1 {offsets = [0, 0, 0], sizes = [8, 16, 8], strides = [1, 1, 1]} : vector<10x18x8xbf16> to vector<8x16x8xbf16>
    %3 = vector.extract_strided_slice %1 {offsets = [0, 1, 0], sizes = [8, 16, 8], strides = [1, 1, 1]} : vector<10x18x8xbf16> to vector<8x16x8xbf16>
    %4 = vector.extract_strided_slice %1 {offsets = [0, 2, 0], sizes = [8, 16, 8], strides = [1, 1, 1]} : vector<10x18x8xbf16> to vector<8x16x8xbf16>
    %5 = vector.extract_strided_slice %1 {offsets = [1, 0, 0], sizes = [8, 16, 8], strides = [1, 1, 1]} : vector<10x18x8xbf16> to vector<8x16x8xbf16>
    %6 = vector.extract_strided_slice %1 {offsets = [1, 1, 0], sizes = [8, 16, 8], strides = [1, 1, 1]} : vector<10x18x8xbf16> to vector<8x16x8xbf16>
    %7 = vector.extract_strided_slice %1 {offsets = [1, 2, 0], sizes = [8, 16, 8], strides = [1, 1, 1]} : vector<10x18x8xbf16> to vector<8x16x8xbf16>
    %8 = vector.extract_strided_slice %1 {offsets = [2, 0, 0], sizes = [8, 16, 8], strides = [1, 1, 1]} : vector<10x18x8xbf16> to vector<8x16x8xbf16>
    %9 = vector.extract_strided_slice %1 {offsets = [2, 1, 0], sizes = [8, 16, 8], strides = [1, 1, 1]} : vector<10x18x8xbf16> to vector<8x16x8xbf16>
    %10 = vector.extract_strided_slice %1 {offsets = [2, 2, 0], sizes = [8, 16, 8], strides = [1, 1, 1]} : vector<10x18x8xbf16> to vector<8x16x8xbf16>
    %11 = tpu.concatenate %2, %3, %4, %5, %6, %7, %8, %9, %10 in 2 : vector<8x16x8xbf16>, vector<8x16x8xbf16>, vector<8x16x8xbf16>, vector<8x16x8xbf16>, vector<8x16x8xbf16>, vector<8x16x8xbf16>, vector<8x16x8xbf16>, vector<8x16x8xbf16>, vector<8x16x8xbf16> -> vector<8x16x72xbf16>
    %12 = vector.shape_cast %11 : vector<8x16x72xbf16> to vector<128x72xbf16>
    %c0_3 = arith.constant 0 : index
    %c0_4 = arith.constant 0 : index
    %13 = vector.load %arg2[%c0_3, %c0_4] : memref<72x128xbf16, #tpu.memory_space<vmem>>, vector<72x128xbf16>
    %cst = arith.constant dense<0.000000e+00> : vector<128x128xf32>
    %14 = tpu.matmul %12, %13, %cst {dimension_numbers = #tpu.dot_dimension_numbers<[1], [0], [0], [1], [0, 0, 1, 1], [], []>} : vector<128x72xbf16>, vector<72x128xbf16>, vector<128x128xf32> -> vector<128x128xf32>
    %c0_5 = arith.constant 0 : index
    %c0_6 = arith.constant 0 : index
    %15 = vector.load %arg3[%c0_5, %c0_6] : memref<1x128xf32, #tpu.memory_space<vmem>>, vector<1x128xf32>
    %16 = vector.broadcast %15 : vector<1x128xf32> to vector<128x128xf32>
    %17 = arith.addf %14, %16 : vector<128x128xf32>
    %cst_7 = arith.constant 0.000000e+00 : f32
    %18 = vector.broadcast %cst_7 : f32 to vector<128x128xf32>
    %19 = arith.maximumf %17, %18 : vector<128x128xf32>
    %20 = vector.shape_cast %19 : vector<128x128xf32> to vector<8x16x128xf32>
    %21 = arith.truncf %20 : vector<8x16x128xf32> to vector<8x16x128xbf16>
    %c0_8 = arith.constant 0 : index
    %c0_9 = arith.constant 0 : index
    %c0_10 = arith.constant 0 : index
    %c0_11 = arith.constant 0 : index
    %22 = vector.load %arg4[%c0_8, %c0_9, %c0_10, %c0_11] : memref<1x16x16x128xbf16, #tpu.memory_space<vmem>>, vector<1x8x16x128xbf16>
    %23 = vector.shape_cast %22 : vector<1x8x16x128xbf16> to vector<8x16x128xbf16>
    %24 = vector.shape_cast %21 : vector<8x16x128xbf16> to vector<1x8x16x128xbf16>
    tpu.vector_store %arg4[%c0_8, %c0_9, %c0_10, %c0_11], %24 {strides = array<i32>} : memref<1x16x16x128xbf16, #tpu.memory_space<vmem>>, vector<1x8x16x128xbf16>,
    %c0_12 = arith.constant 0 : index
    %c8 = arith.constant 8 : index
    %c0_13 = arith.constant 0 : index
    %c0_14 = arith.constant 0 : index
    %25 = vector.load %arg1[%c0_12, %c8, %c0_13, %c0_14] : memref<1x18x18x8xbf16, #tpu.memory_space<vmem>>, vector<1x10x18x8xbf16>
    %26 = vector.shape_cast %25 : vector<1x10x18x8xbf16> to vector<10x18x8xbf16>
    %27 = vector.extract_strided_slice %26 {offsets = [0, 0, 0], sizes = [8, 16, 8], strides = [1, 1, 1]} : vector<10x18x8xbf16> to vector<8x16x8xbf16>
    %28 = vector.extract_strided_slice %26 {offsets = [0, 1, 0], sizes = [8, 16, 8], strides = [1, 1, 1]} : vector<10x18x8xbf16> to vector<8x16x8xbf16>
    %29 = vector.extract_strided_slice %26 {offsets = [0, 2, 0], sizes = [8, 16, 8], strides = [1, 1, 1]} : vector<10x18x8xbf16> to vector<8x16x8xbf16>
    %30 = vector.extract_strided_slice %26 {offsets = [1, 0, 0], sizes = [8, 16, 8], strides = [1, 1, 1]} : vector<10x18x8xbf16> to vector<8x16x8xbf16>
    %31 = vector.extract_strided_slice %26 {offsets = [1, 1, 0], sizes = [8, 16, 8], strides = [1, 1, 1]} : vector<10x18x8xbf16> to vector<8x16x8xbf16>
    %32 = vector.extract_strided_slice %26 {offsets = [1, 2, 0], sizes = [8, 16, 8], strides = [1, 1, 1]} : vector<10x18x8xbf16> to vector<8x16x8xbf16>
    %33 = vector.extract_strided_slice %26 {offsets = [2, 0, 0], sizes = [8, 16, 8], strides = [1, 1, 1]} : vector<10x18x8xbf16> to vector<8x16x8xbf16>
    %34 = vector.extract_strided_slice %26 {offsets = [2, 1, 0], sizes = [8, 16, 8], strides = [1, 1, 1]} : vector<10x18x8xbf16> to vector<8x16x8xbf16>
    %35 = vector.extract_strided_slice %26 {offsets = [2, 2, 0], sizes = [8, 16, 8], strides = [1, 1, 1]} : vector<10x18x8xbf16> to vector<8x16x8xbf16>
    %36 = tpu.concatenate %27, %28, %29, %30, %31, %32, %33, %34, %35 in 2 : vector<8x16x8xbf16>, vector<8x16x8xbf16>, vector<8x16x8xbf16>, vector<8x16x8xbf16>, vector<8x16x8xbf16>, vector<8x16x8xbf16>, vector<8x16x8xbf16>, vector<8x16x8xbf16>, vector<8x16x8xbf16> -> vector<8x16x72xbf16>
    %37 = vector.shape_cast %36 : vector<8x16x72xbf16> to vector<128x72xbf16>
    %c0_15 = arith.constant 0 : index
    %c0_16 = arith.constant 0 : index
    %38 = vector.load %arg2[%c0_15, %c0_16] : memref<72x128xbf16, #tpu.memory_space<vmem>>, vector<72x128xbf16>
    %cst_17 = arith.constant dense<0.000000e+00> : vector<128x128xf32>
    %39 = tpu.matmul %37, %38, %cst_17 {dimension_numbers = #tpu.dot_dimension_numbers<[1], [0], [0], [1], [0, 0, 1, 1], [], []>} : vector<128x72xbf16>, vector<72x128xbf16>, vector<128x128xf32> -> vector<128x128xf32>
    %c0_18 = arith.constant 0 : index
    %c0_19 = arith.constant 0 : index
    %40 = vector.load %arg3[%c0_18, %c0_19] : memref<1x128xf32, #tpu.memory_space<vmem>>, vector<1x128xf32>
    %41 = vector.broadcast %40 : vector<1x128xf32> to vector<128x128xf32>
    %42 = arith.addf %39, %41 : vector<128x128xf32>
    %cst_20 = arith.constant 0.000000e+00 : f32
    %43 = vector.broadcast %cst_20 : f32 to vector<128x128xf32>
    %44 = arith.maximumf %42, %43 : vector<128x128xf32>
    %45 = vector.shape_cast %44 : vector<128x128xf32> to vector<8x16x128xf32>
    %46 = arith.truncf %45 : vector<8x16x128xf32> to vector<8x16x128xbf16>
    %c0_21 = arith.constant 0 : index
    %c8_22 = arith.constant 8 : index
    %c0_23 = arith.constant 0 : index
    %c0_24 = arith.constant 0 : index
    %47 = vector.load %arg4[%c0_21, %c8_22, %c0_23, %c0_24] : memref<1x16x16x128xbf16, #tpu.memory_space<vmem>>, vector<1x8x16x128xbf16>
    %48 = vector.shape_cast %47 : vector<1x8x16x128xbf16> to vector<8x16x128xbf16>
    %49 = vector.shape_cast %46 : vector<8x16x128xbf16> to vector<1x8x16x128xbf16>
    tpu.vector_store %arg4[%c0_21, %c8_22, %c0_23, %c0_24], %49 {strides = array<i32>} : memref<1x16x16x128xbf16, #tpu.memory_space<vmem>>, vector<1x8x16x128xbf16>,
    return
  }
  func.func @transform_0(%arg0: i32) -> (i32, i32, i32, i32) {
    %c0_i32 = arith.constant 0 : i32
    %c0_i32_0 = arith.constant 0 : i32
    %c0_i32_1 = arith.constant 0 : i32
    %c0_i32_2 = arith.constant 0 : i32
    return %arg0, %c0_i32, %c0_i32_0, %c0_i32_1 : i32, i32, i32, i32
  }
  func.func @transform_1(%arg0: i32) -> (i32, i32) {
    %c0_i32 = arith.constant 0 : i32
    %c0_i32_0 = arith.constant 0 : i32
    %c0_i32_1 = arith.constant 0 : i32
    return %c0_i32, %c0_i32_0 : i32, i32
  }
  func.func @transform_2(%arg0: i32) -> (i32, i32) {
    %c0_i32 = arith.constant 0 : i32
    %c0_i32_0 = arith.constant 0 : i32
    %c0_i32_1 = arith.constant 0 : i32
    return %c0_i32, %c0_i32_0 : i32, i32
  }
  func.func @transform_3(%arg0: i32) -> (i32, i32, i32, i32) {
    %c0_i32 = arith.constant 0 : i32
    %c0_i32_0 = arith.constant 0 : i32
    %c0_i32_1 = arith.constant 0 : i32
    %c0_i32_2 = arith.constant 0 : i32
    return %arg0, %c0_i32, %c0_i32_0, %c0_i32_1 : i32, i32, i32, i32
  }
}

</mosaic_0001>

<llo_original>
// kernel: tpu_custom_call.1
$region0: #{tpu_custom_call.1}
  #allocation0 [shape = 'u32[]', space=smem, size = 0x4, offset = 0x4, fixed_abs, tag = 'smem constant byte address 0x4 - core index']
  #allocation1 [shape = 'u32[72,128]{1,0:T(1,128)}', space=vmem, size = 0x9000, scoped, tag = 'internal scratch']
  %s0 = inlined_call_operand.vmem [shape: bf16[2,18,18,8], index: 0, kind: input, shape index: {}]
  %s1 = inlined_call_operand.vmem [shape: bf16[72,128], index: 1, kind: input, shape index: {}]
  %s2 = inlined_call_operand.vmem [shape: f32[1,128], index: 2, kind: input, shape index: {}]
  %s3 = inlined_call_operand.hbm [shape: bf16[2,16,16,128], index: 3, kind: output, shape index: {}]
  %s4 = sld [smem:[#allocation0]]
  $region45: #{tpu_custom_call.1} parent=0
    _
  %s6 = ssub.s32 1, %s4
  %s7 = scalar_select 0, %s6, %s4
  $region1: #{tpu_custom_call.1} parent=0
    #allocation2 [shape = 'u8[131072]{0}', space=vmem, size = 0x20000, scoped, tag = 'output window, operand 0']
    #allocation3 [shape = 's32[2]{0}', space=sflag, size = 0x8, scoped, tag = 'scoped memory for tpu_custom_call.1']
    %8 = vsyncpa [#allocation3], 0
    %s9 = scalar_lea.sflag [#allocation3], 1
    %10 = vsyncpa %s9, 0
    loop: start=0, step=1, limit=4
    $region2: #{tpu_custom_call.1} parent=1 // loop_pre_header
      _
    $region3: #{tpu_custom_call.1} parent=1 // loop_header
      %s12 = sphi 0, %s16
      %p13 = scmp.ge.s32.totalorder %s12, 4
      %s22 = sphi 0, %s24
      %s25 = sphi 0, %s22
      %s26 = sphi 0, %s25
      %s42 = sphi 0, %s26
      %s46 = sphi 0, %s46
      %s48 = sphi 0, %s46
      %s49 = sphi 0, %s48
      %s63 = sphi 0, %s49
      %s67 = sphi 0, %s67
      %s69 = sphi 0, %s67
      %s70 = sphi 0, %s69
      %s84 = sphi 0, %s70
      %s90 = sphi 0, %s92
      %s93 = sphi 0, %s90
      %s94 = sphi 0, %s93
      %s110 = sphi 0, %s94
    $region4: #{tpu_custom_call.1} parent=1 // loop_header_branch
      %15 = sbr.rel (%p13) target = $region8
    $region5: #{tpu_custom_call.1} parent=1 // loop_body
      %s17 = ssub.s32 %s12, 1
      %s18 = ssub.s32 %s12, 2
      %s19 = sadd.s32 %s12, 1
      %s20 = ssub.s32 %s12, %s19
      %p21 = scmp.eq.s32.totalorder %s20, 0
      %s23 = sadd.s32 %s22, 1
      %s24 = scalar_select %p21, %s22, %s23
      %p27 = pneg %p21
      %p28 = scmp.eq.s32.totalorder %s12, 1
      %p29 = por %p27, %p28
      %p30 = scmp.ne.s32.totalorder %s22, %s25
      %p31 = scmp.eq.s32.totalorder %s12, 0
      %p32 = por %p30, %p31
      %p33 = scmp.ne.s32.totalorder %s22, %s25
      %p34 = scmp.eq.s32.totalorder %s17, 1
      %p35 = por %p33, %p34
      %p36 = scmp.ne.s32.totalorder %s25, %s26
      %p37 = scmp.eq.s32.totalorder %s17, 0
      %p38 = por %p36, %p37
      %p39 = scmp.ne.s32.totalorder %s25, %s26
      %p40 = scmp.eq.s32.totalorder %s18, 1
      %p41 = por %p39, %p40
      %p43 = scmp.ne.s32.totalorder %s26, %s42
      %p44 = scmp.eq.s32.totalorder %s18, 0
      %p45 = por %p43, %p44
      %s47 = sadd.s32 %s46, 1
      %p50 = scmp.eq.s32.totalorder %s12, 1
      %p51 = scmp.ne.s32.totalorder %s46, %s48
      %p52 = scmp.eq.s32.totalorder %s12, 0
      %p53 = por %p51, %p52
      %p54 = scmp.ne.s32.totalorder %s46, %s48
      %p55 = scmp.eq.s32.totalorder %s17, 1
      %p56 = por %p54, %p55
      %p57 = scmp.ne.s32.totalorder %s48, %s49
      %p58 = scmp.eq.s32.totalorder %s17, 0
      %p59 = por %p57, %p58
      %p60 = scmp.ne.s32.totalorder %s48, %s49
      %p61 = scmp.eq.s32.totalorder %s18, 1
      %p62 = por %p60, %p61
      %p64 = scmp.ne.s32.totalorder %s49, %s63
      %p65 = scmp.eq.s32.totalorder %s18, 0
      %p66 = por %p64, %p65
      %s68 = sadd.s32 %s67, 1
      %p71 = scmp.eq.s32.totalorder %s12, 1
      %p72 = scmp.ne.s32.totalorder %s67, %s69
      %p73 = scmp.eq.s32.totalorder %s12, 0
      %p74 = por %p72, %p73
      %p75 = scmp.ne.s32.totalorder %s67, %s69
      %p76 = scmp.eq.s32.totalorder %s17, 1
      %p77 = por %p75, %p76
      %p78 = scmp.ne.s32.totalorder %s69, %s70
      %p79 = scmp.eq.s32.totalorder %s17, 0
      %p80 = por %p78, %p79
      %p81 = scmp.ne.s32.totalorder %s69, %s70
      %p82 = scmp.eq.s32.totalorder %s18, 1
      %p83 = por %p81, %p82
      %p85 = scmp.ne.s32.totalorder %s70, %s84
      %p86 = scmp.eq.s32.totalorder %s18, 0
      %p87 = por %p85, %p86
      %s88 = ssub.s32 %s12, %s19
      %p89 = scmp.eq.s32.totalorder %s88, 0
      %s91 = sadd.s32 %s90, 1
      %s92 = scalar_select %p89, %s90, %s91
      %p95 = pneg %p89
      %p96 = scmp.eq.s32.totalorder %s12, 1
      %p97 = por %p95, %p96
      %p98 = scmp.ne.s32.totalorder %s90, %s93
      %p99 = scmp.eq.s32.totalorder %s12, 0
      %p100 = por %p98, %p99
      %p101 = scmp.ne.s32.totalorder %s90, %s93
      %p102 = scmp.eq.s32.totalorder %s17, 1
      %p103 = por %p101, %p102
      %p104 = scmp.ne.s32.totalorder %s93, %s94
      %p105 = scmp.eq.s32.totalorder %s17, 0
      %p106 = por %p104, %p105
      %p107 = scmp.ne.s32.totalorder %s93, %s94
      %p108 = scmp.eq.s32.totalorder %s18, 1
      %p109 = por %p107, %p108
      %p111 = scmp.ne.s32.totalorder %s94, %s110
      %p112 = scmp.eq.s32.totalorder %s18, 0
      %p113 = por %p111, %p112
      %p114 = scmp.le.s32.totalorder 1, %s12
      %p115 = scmp.lt.s32.totalorder %s12, 3
      %p116 = pnand %p114, %p115
      %p117 = pneg %p116
      // Predicated region
      $region9: #{tpu_custom_call.1} parent=5 // pred_check
        _
      $region10: #{tpu_custom_call.1} parent=5 // pred_check_branch
        %119 = sbr.rel (%p116) target = $region12
      $region11: #{tpu_custom_call.1} parent=5 // pred_region
        %s120 = ssub.s32 %s12, 1
        // Predicated region
        $region13: #{tpu_custom_call.1} parent=11 // pred_check
          %p121 = pneg %p59
        $region14: #{tpu_custom_call.1} parent=11 // pred_check_branch
          %123 = sbr.rel (%p121) target = $region16
        $region15: #{tpu_custom_call.1} parent=11 // pred_region
          _
        $region16: #{tpu_custom_call.1} parent=11 // pred_fallthru
          _
        // Predicated region
        $region17: #{tpu_custom_call.1} parent=11 // pred_check
          %p124 = pneg %p80
        $region18: #{tpu_custom_call.1} parent=11 // pred_check_branch
          %126 = sbr.rel (%p124) target = $region20
        $region19: #{tpu_custom_call.1} parent=11 // pred_region
          _
        $region20: #{tpu_custom_call.1} parent=11 // pred_fallthru
          _
      $region12: #{tpu_custom_call.1} parent=5 // pred_fallthru
        _
      %p127 = scmp.lt.s32.totalorder %s12, 2
      // Predicated region
      $region21: #{tpu_custom_call.1} parent=5 // pred_check
        %p128 = pneg %p127
      $region22: #{tpu_custom_call.1} parent=5 // pred_check_branch
        %130 = sbr.rel (%p128) target = $region24
      $region23: #{tpu_custom_call.1} parent=5 // pred_region
        // Predicated region
        $region25: #{tpu_custom_call.1} parent=23 // pred_check
          %p131 = pneg %p32
        $region26: #{tpu_custom_call.1} parent=23 // pred_check_branch
          %133 = sbr.rel (%p131) target = $region28
        $region27: #{tpu_custom_call.1} parent=23 // pred_region
          %p134 = scmp.lt.s32.totalorder %s12, 1
          %s135 = scalar_select %p134, %s12, 1
          %s136 = smul.addr %s135, 54
          %s137 = smul.addr %s136, 4
          %s138 = scalar_lea.vmem %s0, %s137
        $region28: #{tpu_custom_call.1} parent=23 // pred_fallthru
          _
      $region24: #{tpu_custom_call.1} parent=5 // pred_fallthru
        _
      %p139 = scmp.le.s32.totalorder 1, %s12
      %p140 = scmp.lt.s32.totalorder %s12, 3
      %p141 = pnand %p139, %p140
      %p142 = pneg %p141
      // Predicated region
      $region29: #{tpu_custom_call.1} parent=5 // pred_check
        _
      $region30: #{tpu_custom_call.1} parent=5 // pred_check_branch
        %144 = sbr.rel (%p141) target = $region32
      $region31: #{tpu_custom_call.1} parent=5 // pred_region
        %s145 = ssub.s32 %s12, 1
        %p146 = scmp.lt.s32.totalorder %s17, 1
        %s147 = scalar_select %p146, %s17, 1
        %s148 = smul.addr %s147, 54
        %s149 = smul.addr %s148, 4
        %s150 = scalar_lea.vmem %s0, %s149
        %p151 = pneg %p38
        %p152 = pneg %p35
        %p153 = pneg %p59
        %p154 = pneg %p56
        %p155 = pneg %p80
        %p156 = pneg %p77
        %p157 = pneg %p106
        %p158 = pneg %p103
        %s159 = sand.u32 %s93, 1
        %s160 = scalar_lea.sflag [#allocation3], %s159
        %s161 = sand.u32 %s93, 1
        %s162 = smul.addr %s161, 128
        %s163 = scalar_lea.vmem [#allocation2], %s162
        %p164 = scmp.lt.s32.totalorder %s17, 1
        %s165 = scalar_select %p164, %s17, 1
        %s166 = smul.addr %s165, 54
        %s167 = smul.addr %s166, 4
        %s168 = scalar_lea.vmem %s0, %s167
        %v170 = vld [vmem:[%s168] sm:$0xf]
        %v171 = vld [vmem:[%s168 + $0x4] sm:$0xf]
        %v172 = vld [vmem:[%s168 + $0x8] sm:$0x1]
        %v173 = vld [vmem:[%s168 + $0xc] sm:$0xf]
        %v174 = vld [vmem:[%s168 + $0x10] sm:$0xf]
        %v175 = vld [vmem:[%s168 + $0x14] sm:$0x1]
        %v176 = vld [vmem:[%s168 + $0x18] sm:$0xf]
        %v177 = vld [vmem:[%s168 + $0x1c] sm:$0xf]
        %v178 = vld [vmem:[%s168 + $0x20] sm:$0x1]
        %v179 = vld [vmem:[%s168 + $0x24] sm:$0xf]
        %v180 = vld [vmem:[%s168 + $0x28] sm:$0xf]
        %v181 = vld [vmem:[%s168 + $0x2c] sm:$0x1]
        %v182 = vld [vmem:[%s168 + $0x30] sm:$0xf]
        %v183 = vld [vmem:[%s168 + $0x34] sm:$0xf]
        %v184 = vld [vmem:[%s168 + $0x38] sm:$0x1]
        %v185 = vld [vmem:[%s168 + $0x3c] sm:$0xf]
        %v186 = vld [vmem:[%s168 + $0x40] sm:$0xf]
        %v187 = vld [vmem:[%s168 + $0x44] sm:$0x1]
        %v188 = vld [vmem:[%s168 + $0x48] sm:$0xf]
        %v189 = vld [vmem:[%s168 + $0x4c] sm:$0xf]
        %v190 = vld [vmem:[%s168 + $0x50] sm:$0x1]
        %v191 = vld [vmem:[%s168 + $0x54] sm:$0xf]
        %v192 = vld [vmem:[%s168 + $0x58] sm:$0xf]
        %v193 = vld [vmem:[%s168 + $0x5c] sm:$0x1]
        %v194 = vld [vmem:[%s168 + $0x60] sm:$0xf]
        %v195 = vld [vmem:[%s168 + $0x64] sm:$0xf]
        %v196 = vld [vmem:[%s168 + $0x68] sm:$0x1]
        %v197 = vld [vmem:[%s168 + $0x6c] sm:$0xf]
        %v198 = vld [vmem:[%s168 + $0x70] sm:$0xf]
        %v199 = vld [vmem:[%s168 + $0x74] sm:$0x1]
        %v216 = vunpack.c.l.b16 %v170
        %v217 = vunpack.c.l.b16 %v171
        %v218 = vunpack.c.l.b16 %v173
        %v219 = vunpack.c.l.b16 %v174
        %v220 = vunpack.c.l.b16 %v176
        %v221 = vunpack.c.l.b16 %v177
        %v222 = vunpack.c.l.b16 %v179
        %v223 = vunpack.c.l.b16 %v180
        %v224 = vunpack.c.l.b16 %v182
        %v225 = vunpack.c.l.b16 %v183
        %v226 = vunpack.c.l.b16 %v185
        %v227 = vunpack.c.l.b16 %v186
        %v228 = vunpack.c.l.b16 %v188
        %v229 = vunpack.c.l.b16 %v189
        %v230 = vunpack.c.l.b16 %v191
        %v231 = vunpack.c.l.b16 %v192
        %v232 = vpack.c.b16 %v217, %v216
        %v233 = vpack.c.b16 %v219, %v218
        %v234 = vpack.c.b16 %v221, %v220
        %v235 = vpack.c.b16 %v223, %v222
        %v236 = vpack.c.b16 %v225, %v224
        %v237 = vpack.c.b16 %v227, %v226
        %v238 = vpack.c.b16 %v229, %v228
        %v239 = vpack.c.b16 %v231, %v230
        %v248 = vunpack.c.l.b16 %v172
        %v249 = vunpack.c.l.b16 %v175
        %v250 = vunpack.c.l.b16 %v178
        %v251 = vunpack.c.l.b16 %v181
        %v252 = vunpack.c.l.b16 %v184
        %v253 = vunpack.c.l.b16 %v187
        %v254 = vunpack.c.l.b16 %v190
        %v255 = vunpack.c.l.b16 %v193
        %v256 = vpack.c.b16 %v248, %v248
        %v257 = vpack.c.b16 %v249, %v249
        %v258 = vpack.c.b16 %v250, %v250
        %v259 = vpack.c.b16 %v251, %v251
        %v260 = vpack.c.b16 %v252, %v252
        %v261 = vpack.c.b16 %v253, %v253
        %v262 = vpack.c.b16 %v254, %v254
        %v263 = vpack.c.b16 %v255, %v255
        %vm264 = vsmask.f32 7424
        %v266 = vshrl.u32 %v232, 16
        %v268 = vshll.u32 %v232, 16
        %v270 = vrot.slane %v268, 1
        %v271 = vor.u32 %v266, %v270
        %v273 = vshll.u32 %v256, 16
        %v275 = vrot.slane %v273, 1
        %v276 = vsel %vm264, %v271, %v275
        %v278 = vshrl.u32 %v233, 16
        %v280 = vshll.u32 %v233, 16
        %v282 = vrot.slane %v280, 1
        %v283 = vor.u32 %v278, %v282
        %v285 = vshll.u32 %v257, 16
        %v287 = vrot.slane %v285, 1
        %v288 = vsel %vm264, %v283, %v287
        %v290 = vshrl.u32 %v234, 16
        %v292 = vshll.u32 %v234, 16
        %v294 = vrot.slane %v292, 1
        %v295 = vor.u32 %v290, %v294
        %v297 = vshll.u32 %v258, 16
        %v299 = vrot.slane %v297, 1
        %v300 = vsel %vm264, %v295, %v299
        %v302 = vshrl.u32 %v235, 16
        %v304 = vshll.u32 %v235, 16
        %v306 = vrot.slane %v304, 1
        %v307 = vor.u32 %v302, %v306
        %v309 = vshll.u32 %v259, 16
        %v311 = vrot.slane %v309, 1
        %v312 = vsel %vm264, %v307, %v311
        %v314 = vshrl.u32 %v236, 16
        %v316 = vshll.u32 %v236, 16
        %v318 = vrot.slane %v316, 1
        %v319 = vor.u32 %v314, %v318
        %v321 = vshll.u32 %v260, 16
        %v323 = vrot.slane %v321, 1
        %v324 = vsel %vm264, %v319, %v323
        %v326 = vshrl.u32 %v237, 16
        %v328 = vshll.u32 %v237, 16
        %v330 = vrot.slane %v328, 1
        %v331 = vor.u32 %v326, %v330
        %v333 = vshll.u32 %v261, 16
        %v335 = vrot.slane %v333, 1
        %v336 = vsel %vm264, %v331, %v335
        %v338 = vshrl.u32 %v238, 16
        %v340 = vshll.u32 %v238, 16
        %v342 = vrot.slane %v340, 1
        %v343 = vor.u32 %v338, %v342
        %v345 = vshll.u32 %v262, 16
        %v347 = vrot.slane %v345, 1
        %v348 = vsel %vm264, %v343, %v347
        %v350 = vshrl.u32 %v239, 16
        %v352 = vshll.u32 %v239, 16
        %v354 = vrot.slane %v352, 1
        %v355 = vor.u32 %v350, %v354
        %v357 = vshll.u32 %v263, 16
        %v359 = vrot.slane %v357, 1
        %v360 = vsel %vm264, %v355, %v359
        %361 = vrot.lane.b32.xlu0 %v276, 8
        %v362 = vpop.permute.xlu0 %361
        %363 = vrot.lane.b32.xlu0 %v288, 8
        %v364 = vpop.permute.xlu0 %363
        %365 = vrot.lane.b32.xlu0 %v300, 8
        %v366 = vpop.permute.xlu0 %365
        %367 = vrot.lane.b32.xlu0 %v312, 8
        %v368 = vpop.permute.xlu0 %367
        %369 = vrot.lane.b32.xlu0 %v324, 8
        %v370 = vpop.permute.xlu0 %369
        %371 = vrot.lane.b32.xlu0 %v336, 8
        %v372 = vpop.permute.xlu0 %371
        %373 = vrot.lane.b32.xlu0 %v348, 8
        %v374 = vpop.permute.xlu0 %373
        %375 = vrot.lane.b32.xlu0 %v360, 8
        %v376 = vpop.permute.xlu0 %375
        %vm377 = vcmask 1046528
        %v378 = vrot.slane %v232, 1
        %v379 = vrot.slane %v256, 1
        %v380 = vsel %vm377, %v378, %v379
        %v381 = vrot.slane %v233, 1
        %v382 = vrot.slane %v257, 1
        %v383 = vsel %vm377, %v381, %v382
        %v384 = vrot.slane %v234, 1
        %v385 = vrot.slane %v258, 1
        %v386 = vsel %vm377, %v384, %v385
        %v387 = vrot.slane %v235, 1
        %v388 = vrot.slane %v259, 1
        %v389 = vsel %vm377, %v387, %v388
        %v390 = vrot.slane %v236, 1
        %v391 = vrot.slane %v260, 1
        %v392 = vsel %vm377, %v390, %v391
        %v393 = vrot.slane %v237, 1
        %v394 = vrot.slane %v261, 1
        %v395 = vsel %vm377, %v393, %v394
        %v396 = vrot.slane %v238, 1
        %v397 = vrot.slane %v262, 1
        %v398 = vsel %vm377, %v396, %v397
        %v399 = vrot.slane %v239, 1
        %v400 = vrot.slane %v263, 1
        %v401 = vsel %vm377, %v399, %v400
        %402 = vrot.lane.b32.xlu0 %v380, 16
        %v403 = vpop.permute.xlu0 %402
        %404 = vrot.lane.b32.xlu0 %v383, 16
        %v405 = vpop.permute.xlu0 %404
        %406 = vrot.lane.b32.xlu0 %v386, 16
        %v407 = vpop.permute.xlu0 %406
        %408 = vrot.lane.b32.xlu0 %v389, 16
        %v409 = vpop.permute.xlu0 %408
        %410 = vrot.lane.b32.xlu0 %v392, 16
        %v411 = vpop.permute.xlu0 %410
        %412 = vrot.lane.b32.xlu0 %v395, 16
        %v413 = vpop.permute.xlu0 %412
        %414 = vrot.lane.b32.xlu0 %v398, 16
        %v415 = vpop.permute.xlu0 %414
        %416 = vrot.lane.b32.xlu0 %v401, 16
        %v417 = vpop.permute.xlu0 %416
        %v420 = vunpack.c.l.b16 %v194
        %v421 = vunpack.c.l.b16 %v195
        %v422 = vpack.c.b16 %v421, %v420
        %423 = vrot.lane.b32.xlu0 %v233, 24
        %v424 = vpop.permute.xlu0 %423
        %425 = vrot.lane.b32.xlu0 %v234, 24
        %v426 = vpop.permute.xlu0 %425
        %427 = vrot.lane.b32.xlu0 %v235, 24
        %v428 = vpop.permute.xlu0 %427
        %429 = vrot.lane.b32.xlu0 %v236, 24
        %v430 = vpop.permute.xlu0 %429
        %431 = vrot.lane.b32.xlu0 %v237, 24
        %v432 = vpop.permute.xlu0 %431
        %433 = vrot.lane.b32.xlu0 %v238, 24
        %v434 = vpop.permute.xlu0 %433
        %435 = vrot.lane.b32.xlu0 %v239, 24
        %v436 = vpop.permute.xlu0 %435
        %437 = vrot.lane.b32.xlu0 %v422, 24
        %v438 = vpop.permute.xlu0 %437
        %v440 = vunpack.c.l.b16 %v196
        %v441 = vpack.c.b16 %v440, %v440
        %v443 = vshrl.u32 %v422, 16
        %v445 = vshll.u32 %v422, 16
        %v447 = vrot.slane %v445, 1
        %v448 = vor.u32 %v443, %v447
        %v450 = vshll.u32 %v441, 16
        %v452 = vrot.slane %v450, 1
        %v453 = vsel %vm264, %v448, %v452
        %454 = vrot.lane.b32.xlu0 %v288, 32
        %v455 = vpop.permute.xlu0 %454
        %456 = vrot.lane.b32.xlu0 %v300, 32
        %v457 = vpop.permute.xlu0 %456
        %458 = vrot.lane.b32.xlu0 %v312, 32
        %v459 = vpop.permute.xlu0 %458
        %460 = vrot.lane.b32.xlu0 %v324, 32
        %v461 = vpop.permute.xlu0 %460
        %462 = vrot.lane.b32.xlu0 %v336, 32
        %v463 = vpop.permute.xlu0 %462
        %464 = vrot.lane.b32.xlu0 %v348, 32
        %v465 = vpop.permute.xlu0 %464
        %466 = vrot.lane.b32.xlu0 %v360, 32
        %v467 = vpop.permute.xlu0 %466
        %468 = vrot.lane.b32.xlu0 %v453, 32
        %v469 = vpop.permute.xlu0 %468
        %v470 = vrot.slane %v422, 1
        %v471 = vrot.slane %v441, 1
        %v472 = vsel %vm377, %v470, %v471
        %473 = vrot.lane.b32.xlu0 %v383, 40
        %v474 = vpop.permute.xlu0 %473
        %475 = vrot.lane.b32.xlu0 %v386, 40
        %v476 = vpop.permute.xlu0 %475
        %477 = vrot.lane.b32.xlu0 %v389, 40
        %v478 = vpop.permute.xlu0 %477
        %479 = vrot.lane.b32.xlu0 %v392, 40
        %v480 = vpop.permute.xlu0 %479
        %481 = vrot.lane.b32.xlu0 %v395, 40
        %v482 = vpop.permute.xlu0 %481
        %483 = vrot.lane.b32.xlu0 %v398, 40
        %v484 = vpop.permute.xlu0 %483
        %485 = vrot.lane.b32.xlu0 %v401, 40
        %v486 = vpop.permute.xlu0 %485
        %487 = vrot.lane.b32.xlu0 %v472, 40
        %v488 = vpop.permute.xlu0 %487
        %v491 = vunpack.c.l.b16 %v197
        %v492 = vunpack.c.l.b16 %v198
        %v493 = vpack.c.b16 %v492, %v491
        %494 = vrot.lane.b32.xlu0 %v234, 48
        %v495 = vpop.permute.xlu0 %494
        %496 = vrot.lane.b32.xlu0 %v235, 48
        %v497 = vpop.permute.xlu0 %496
        %498 = vrot.lane.b32.xlu0 %v236, 48
        %v499 = vpop.permute.xlu0 %498
        %500 = vrot.lane.b32.xlu0 %v237, 48
        %v501 = vpop.permute.xlu0 %500
        %502 = vrot.lane.b32.xlu0 %v238, 48
        %v503 = vpop.permute.xlu0 %502
        %504 = vrot.lane.b32.xlu0 %v239, 48
        %v505 = vpop.permute.xlu0 %504
        %506 = vrot.lane.b32.xlu0 %v422, 48
        %v507 = vpop.permute.xlu0 %506
        %508 = vrot.lane.b32.xlu0 %v493, 48
        %v509 = vpop.permute.xlu0 %508
        %v511 = vunpack.c.l.b16 %v199
        %v512 = vpack.c.b16 %v511, %v511
        %v514 = vshrl.u32 %v493, 16
        %v516 = vshll.u32 %v493, 16
        %v518 = vrot.slane %v516, 1
        %v519 = vor.u32 %v514, %v518
        %v521 = vshll.u32 %v512, 16
        %v523 = vrot.slane %v521, 1
        %v524 = vsel %vm264, %v519, %v523
        %525 = vrot.lane.b32.xlu0 %v300, 56
        %v526 = vpop.permute.xlu0 %525
        %527 = vrot.lane.b32.xlu0 %v312, 56
        %v528 = vpop.permute.xlu0 %527
        %529 = vrot.lane.b32.xlu0 %v324, 56
        %v530 = vpop.permute.xlu0 %529
        %531 = vrot.lane.b32.xlu0 %v336, 56
        %v532 = vpop.permute.xlu0 %531
        %533 = vrot.lane.b32.xlu0 %v348, 56
        %v534 = vpop.permute.xlu0 %533
        %535 = vrot.lane.b32.xlu0 %v360, 56
        %v536 = vpop.permute.xlu0 %535
        %537 = vrot.lane.b32.xlu0 %v453, 56
        %v538 = vpop.permute.xlu0 %537
        %539 = vrot.lane.b32.xlu0 %v524, 56
        %v540 = vpop.permute.xlu0 %539
        %v541 = vrot.slane %v493, 1
        %v542 = vrot.slane %v512, 1
        %v543 = vsel %vm377, %v541, %v542
        %544 = vrot.lane.b32.xlu0 %v386, 64
        %v545 = vpop.permute.xlu0 %544
        %546 = vrot.lane.b32.xlu0 %v389, 64
        %v547 = vpop.permute.xlu0 %546
        %548 = vrot.lane.b32.xlu0 %v392, 64
        %v549 = vpop.permute.xlu0 %548
        %550 = vrot.lane.b32.xlu0 %v395, 64
        %v551 = vpop.permute.xlu0 %550
        %552 = vrot.lane.b32.xlu0 %v398, 64
        %v553 = vpop.permute.xlu0 %552
        %554 = vrot.lane.b32.xlu0 %v401, 64
        %v555 = vpop.permute.xlu0 %554
        %556 = vrot.lane.b32.xlu0 %v472, 64
        %v557 = vpop.permute.xlu0 %556
        %558 = vrot.lane.b32.xlu0 %v543, 64
        %v559 = vpop.permute.xlu0 %558
        %vm560 = vcmask 64512
        %v562 = vsel %vm560, %v232, %v362
        %v564 = vsel %vm560, %v233, %v364
        %v566 = vsel %vm560, %v234, %v366
        %v568 = vsel %vm560, %v235, %v368
        %v570 = vsel %vm560, %v236, %v370
        %v572 = vsel %vm560, %v237, %v372
        %v574 = vsel %vm560, %v238, %v374
        %v576 = vsel %vm560, %v239, %v376
        %vm577 = vcmask 130048
        %v579 = vsel %vm577, %v562, %v403
        %v581 = vsel %vm577, %v564, %v405
        %v583 = vsel %vm577, %v566, %v407
        %v585 = vsel %vm577, %v568, %v409
        %v587 = vsel %vm577, %v570, %v411
        %v589 = vsel %vm577, %v572, %v413
        %v591 = vsel %vm577, %v574, %v415
        %v593 = vsel %vm577, %v576, %v417
        %vm594 = vcmask 195584
        %v596 = vsel %vm594, %v579, %v424
        %v598 = vsel %vm594, %v581, %v426
        %v600 = vsel %vm594, %v583, %v428
        %v602 = vsel %vm594, %v585, %v430
        %v604 = vsel %vm594, %v587, %v432
        %v606 = vsel %vm594, %v589, %v434
        %v608 = vsel %vm594, %v591, %v436
        %v610 = vsel %vm594, %v593, %v438
        %vm611 = vcmask 261120
        %v613 = vsel %vm611, %v596, %v455
        %v615 = vsel %vm611, %v598, %v457
        %v617 = vsel %vm611, %v600, %v459
        %v619 = vsel %vm611, %v602, %v461
        %v621 = vsel %vm611, %v604, %v463
        %v623 = vsel %vm611, %v606, %v465
        %v625 = vsel %vm611, %v608, %v467
        %v627 = vsel %vm611, %v610, %v469
        %vm628 = vcmask 326656
        %v630 = vsel %vm628, %v613, %v474
        %v632 = vsel %vm628, %v615, %v476
        %v634 = vsel %vm628, %v617, %v478
        %v636 = vsel %vm628, %v619, %v480
        %v638 = vsel %vm628, %v621, %v482
        %v640 = vsel %vm628, %v623, %v484
        %v642 = vsel %vm628, %v625, %v486
        %v644 = vsel %vm628, %v627, %v488
        %vm645 = vcmask 392192
        %v647 = vsel %vm645, %v630, %v495
        %v649 = vsel %vm645, %v632, %v497
        %v651 = vsel %vm645, %v634, %v499
        %v653 = vsel %vm645, %v636, %v501
        %v655 = vsel %vm645, %v638, %v503
        %v657 = vsel %vm645, %v640, %v505
        %v659 = vsel %vm645, %v642, %v507
        %v661 = vsel %vm645, %v644, %v509
        %vm662 = vcmask 457728
        %v664 = vsel %vm662, %v647, %v526
        %v666 = vsel %vm662, %v649, %v528
        %v668 = vsel %vm662, %v651, %v530
        %v670 = vsel %vm662, %v653, %v532
        %v672 = vsel %vm662, %v655, %v534
        %v674 = vsel %vm662, %v657, %v536
        %v676 = vsel %vm662, %v659, %v538
        %v678 = vsel %vm662, %v661, %v540
        %vm679 = vcmask 523264
        %v681 = vsel %vm679, %v664, %v545
        %v683 = vsel %vm679, %v666, %v547
        %v685 = vsel %vm679, %v668, %v549
        %v687 = vsel %vm679, %v670, %v551
        %v689 = vsel %vm679, %v672, %v553
        %v691 = vsel %vm679, %v674, %v555
        %v693 = vsel %vm679, %v676, %v557
        %v695 = vsel %vm679, %v678, %v559
        %v696 = vld [vmem:[%s1] sm:$0xf]
        %v697 = vld [vmem:[%s1 + $0x4] sm:$0xf]
        %v698 = vld [vmem:[%s1 + $0x8] sm:$0xf]
        %v699 = vld [vmem:[%s1 + $0xc] sm:$0xf]
        %v700 = vld [vmem:[%s1 + $0x10] sm:$0xf]
        %v701 = vld [vmem:[%s1 + $0x14] sm:$0xf]
        %v702 = vld [vmem:[%s1 + $0x18] sm:$0xf]
        %v703 = vld [vmem:[%s1 + $0x1c] sm:$0xf]
        %v704 = vld [vmem:[%s1 + $0x20] sm:$0xf]
        %v705 = vld [vmem:[%s2] sm:$0x1]
        %v707 = vperm.slane %v705, 0
        %v718 = vunpack.c.l.b16 %v696
        %v719 = vunpack.c.l.b16 %v697
        %v720 = vunpack.c.l.b16 %v698
        %v721 = vunpack.c.l.b16 %v699
        %v722 = vunpack.c.l.b16 %v700
        %v723 = vunpack.c.l.b16 %v701
        %v724 = vunpack.c.l.b16 %v702
        %v725 = vunpack.c.l.b16 %v703
        %v726 = vunpack.c.l.b16 %v704
        %v727 = vpack.c.b16 %v719, %v718
        %v728 = vpack.c.b16 %v721, %v720
        %v729 = vpack.c.b16 %v723, %v722
        %v730 = vpack.c.b16 %v725, %v724
        %v731 = vpack.c.b16 %v726, %v726
        %vm736 = vcmask 588800
        %v737 = vsel %vm736, %v681, 0
        %v739 = vsel %vm736, %v683, 0
        %v741 = vsel %vm736, %v685, 0
        %v743 = vsel %vm736, %v687, 0
        %v745 = vsel %vm736, %v689, 0
        %v747 = vsel %vm736, %v691, 0
        %v749 = vsel %vm736, %v693, 0
        %v751 = vsel %vm736, %v695, 0
        %vm753 = vcmask 1043456
        %v755 = vsel %vm753, %v731, 0
        %757 = vmatpush.bf16.msra.mxu0 0
        %758 = vmatpush.bf16.msra.mxu0 0
        %759 = vmatpush.bf16.msra.mxu0 0
        %760 = vmatpush.bf16.msra.mxu0 %v755
        %761 = vmatpush.bf16.msra.mxu0 %v730
        %762 = vmatpush.bf16.msra.mxu0 %v729
        %763 = vmatpush.bf16.msra.mxu0 %v728
        %764 = vmatpush.bf16.msra.mxu0 %v727
        %765 = vmatmul.bf16.gmra.mxu0 %v737
        %v766 = vpop.f32.mrf.mxu0
        %v767 = vadd.f32 %v707, %v766
        %v768 = vpop.f32.mrf.mxu0
        %v769 = vadd.f32 %v707, %v768
        %770 = vmatmul.bf16.gmra.mxu0 %v739
        %v771 = vpop.f32.mrf.mxu0
        %v772 = vadd.f32 %v707, %v771
        %v773 = vpop.f32.mrf.mxu0
        %v774 = vadd.f32 %v707, %v773
        %775 = vmatmul.bf16.gmra.mxu0 %v741
        %v776 = vpop.f32.mrf.mxu0
        %v777 = vadd.f32 %v707, %v776
        %v778 = vpop.f32.mrf.mxu0
        %v779 = vadd.f32 %v707, %v778
        %780 = vmatmul.bf16.gmra.mxu0 %v743
        %v781 = vpop.f32.mrf.mxu0
        %v782 = vadd.f32 %v707, %v781
        %v783 = vpop.f32.mrf.mxu0
        %v784 = vadd.f32 %v707, %v783
        %785 = vmatmul.bf16.gmra.mxu0 %v745
        %v786 = vpop.f32.mrf.mxu0
        %v787 = vadd.f32 %v707, %v786
        %v788 = vpop.f32.mrf.mxu0
        %v789 = vadd.f32 %v707, %v788
        %790 = vmatmul.bf16.gmra.mxu0 %v747
        %v791 = vpop.f32.mrf.mxu0
        %v792 = vadd.f32 %v707, %v791
        %v793 = vpop.f32.mrf.mxu0
        %v794 = vadd.f32 %v707, %v793
        %795 = vmatmul.bf16.gmra.mxu0 %v749
        %v796 = vpop.f32.mrf.mxu0
        %v797 = vadd.f32 %v707, %v796
        %v798 = vpop.f32.mrf.mxu0
        %v799 = vadd.f32 %v707, %v798
        %800 = vmatmul.bf16.gmra.mxu0 %v751
        %v801 = vpop.f32.mrf.mxu0
        %v802 = vadd.f32 %v707, %v801
        %v803 = vpop.f32.mrf.mxu0
        %v804 = vadd.f32 %v707, %v803
        %805 = vdwg.mxu0
        %v806 = vmax.f32 %v767, 0.0
        %v807 = vmax.f32 %v769, 0.0
        %v808 = vmax.f32 %v772, 0.0
        %v809 = vmax.f32 %v774, 0.0
        %v810 = vmax.f32 %v777, 0.0
        %v811 = vmax.f32 %v779, 0.0
        %v812 = vmax.f32 %v782, 0.0
        %v813 = vmax.f32 %v784, 0.0
        %v814 = vmax.f32 %v787, 0.0
        %v815 = vmax.f32 %v789, 0.0
        %v816 = vmax.f32 %v792, 0.0
        %v817 = vmax.f32 %v794, 0.0
        %v818 = vmax.f32 %v797, 0.0
        %v819 = vmax.f32 %v799, 0.0
        %v820 = vmax.f32 %v802, 0.0
        %v821 = vmax.f32 %v804, 0.0
        %v822 = vpack.c.bf16 %v806, %v806
        %v823 = vpack.c.bf16 %v807, %v807
        %v824 = vpack.c.bf16 %v808, %v808
        %v825 = vpack.c.bf16 %v809, %v809
        %v826 = vpack.c.bf16 %v810, %v810
        %v827 = vpack.c.bf16 %v811, %v811
        %v828 = vpack.c.bf16 %v812, %v812
        %v829 = vpack.c.bf16 %v813, %v813
        %v830 = vpack.c.bf16 %v814, %v814
        %v831 = vpack.c.bf16 %v815, %v815
        %v832 = vpack.c.bf16 %v816, %v816
        %v833 = vpack.c.bf16 %v817, %v817
        %v834 = vpack.c.bf16 %v818, %v818
        %v835 = vpack.c.bf16 %v819, %v819
        %v836 = vpack.c.bf16 %v820, %v820
        %v837 = vpack.c.bf16 %v821, %v821
        %838 = vst [vmem:[%s163] sm:$0xf] %v822
        %839 = vst [vmem:[%s163 + $0x4] sm:$0xf] %v823
        %840 = vst [vmem:[%s163 + $0x8] sm:$0xf] %v824
        %841 = vst [vmem:[%s163 + $0xc] sm:$0xf] %v825
        %842 = vst [vmem:[%s163 + $0x10] sm:$0xf] %v826
        %843 = vst [vmem:[%s163 + $0x14] sm:$0xf] %v827
        %844 = vst [vmem:[%s163 + $0x18] sm:$0xf] %v828
        %845 = vst [vmem:[%s163 + $0x1c] sm:$0xf] %v829
        %846 = vst [vmem:[%s163 + $0x20] sm:$0xf] %v830
        %847 = vst [vmem:[%s163 + $0x24] sm:$0xf] %v831
        %848 = vst [vmem:[%s163 + $0x28] sm:$0xf] %v832
        %849 = vst [vmem:[%s163 + $0x2c] sm:$0xf] %v833
        %850 = vst [vmem:[%s163 + $0x30] sm:$0xf] %v834
        %851 = vst [vmem:[%s163 + $0x34] sm:$0xf] %v835
        %852 = vst [vmem:[%s163 + $0x38] sm:$0xf] %v836
        %853 = vst [vmem:[%s163 + $0x3c] sm:$0xf] %v837
        %s854 = scalar_lea.vmem %s168, 96
        %v855 = vld [vmem:[%s854] sm:$0xf]
        %v856 = vld [vmem:[%s854 + $0x4] sm:$0xf]
        %v857 = vld [vmem:[%s854 + $0x8] sm:$0x1]
        %v858 = vld [vmem:[%s854 + $0xc] sm:$0xf]
        %v859 = vld [vmem:[%s854 + $0x10] sm:$0xf]
        %v860 = vld [vmem:[%s854 + $0x14] sm:$0x1]
        %v861 = vld [vmem:[%s854 + $0x18] sm:$0xf]
        %v862 = vld [vmem:[%s854 + $0x1c] sm:$0xf]
        %v863 = vld [vmem:[%s854 + $0x20] sm:$0x1]
        %v864 = vld [vmem:[%s854 + $0x24] sm:$0xf]
        %v865 = vld [vmem:[%s854 + $0x28] sm:$0xf]
        %v866 = vld [vmem:[%s854 + $0x2c] sm:$0x1]
        %v867 = vld [vmem:[%s854 + $0x30] sm:$0xf]
        %v868 = vld [vmem:[%s854 + $0x34] sm:$0xf]
        %v869 = vld [vmem:[%s854 + $0x38] sm:$0x1]
        %v870 = vld [vmem:[%s854 + $0x3c] sm:$0xf]
        %v871 = vld [vmem:[%s854 + $0x40] sm:$0xf]
        %v872 = vld [vmem:[%s854 + $0x44] sm:$0x1]
        %v873 = vld [vmem:[%s854 + $0x48] sm:$0xf]
        %v874 = vld [vmem:[%s854 + $0x4c] sm:$0xf]
        %v875 = vld [vmem:[%s854 + $0x50] sm:$0x1]
        %v876 = vld [vmem:[%s854 + $0x54] sm:$0xf]
        %v877 = vld [vmem:[%s854 + $0x58] sm:$0xf]
        %v878 = vld [vmem:[%s854 + $0x5c] sm:$0x1]
        %v879 = vld [vmem:[%s854 + $0x60] sm:$0xf]
        %v880 = vld [vmem:[%s854 + $0x64] sm:$0xf]
        %v881 = vld [vmem:[%s854 + $0x68] sm:$0x1]
        %v882 = vld [vmem:[%s854 + $0x6c] sm:$0xf]
        %v883 = vld [vmem:[%s854 + $0x70] sm:$0xf]
        %v884 = vld [vmem:[%s854 + $0x74] sm:$0x1]
        %v901 = vunpack.c.l.b16 %v855
        %v902 = vunpack.c.l.b16 %v856
        %v903 = vunpack.c.l.b16 %v858
        %v904 = vunpack.c.l.b16 %v859
        %v905 = vunpack.c.l.b16 %v861
        %v906 = vunpack.c.l.b16 %v862
        %v907 = vunpack.c.l.b16 %v864
        %v908 = vunpack.c.l.b16 %v865
        %v909 = vunpack.c.l.b16 %v867
        %v910 = vunpack.c.l.b16 %v868
        %v911 = vunpack.c.l.b16 %v870
        %v912 = vunpack.c.l.b16 %v871
        %v913 = vunpack.c.l.b16 %v873
        %v914 = vunpack.c.l.b16 %v874
        %v915 = vunpack.c.l.b16 %v876
        %v916 = vunpack.c.l.b16 %v877
        %v917 = vpack.c.b16 %v902, %v901
        %v918 = vpack.c.b16 %v904, %v903
        %v919 = vpack.c.b16 %v906, %v905
        %v920 = vpack.c.b16 %v908, %v907
        %v921 = vpack.c.b16 %v910, %v909
        %v922 = vpack.c.b16 %v912, %v911
        %v923 = vpack.c.b16 %v914, %v913
        %v924 = vpack.c.b16 %v916, %v915
        %v933 = vunpack.c.l.b16 %v857
        %v934 = vunpack.c.l.b16 %v860
        %v935 = vunpack.c.l.b16 %v863
        %v936 = vunpack.c.l.b16 %v866
        %v937 = vunpack.c.l.b16 %v869
        %v938 = vunpack.c.l.b16 %v872
        %v939 = vunpack.c.l.b16 %v875
        %v940 = vunpack.c.l.b16 %v878
        %v941 = vpack.c.b16 %v933, %v933
        %v942 = vpack.c.b16 %v934, %v934
        %v943 = vpack.c.b16 %v935, %v935
        %v944 = vpack.c.b16 %v936, %v936
        %v945 = vpack.c.b16 %v937, %v937
        %v946 = vpack.c.b16 %v938, %v938
        %v947 = vpack.c.b16 %v939, %v939
        %v948 = vpack.c.b16 %v940, %v940
        %v950 = vshrl.u32 %v917, 16
        %v952 = vshll.u32 %v917, 16
        %v954 = vrot.slane %v952, 1
        %v955 = vor.u32 %v950, %v954
        %v957 = vshll.u32 %v941, 16
        %v959 = vrot.slane %v957, 1
        %v960 = vsel %vm264, %v955, %v959
        %v962 = vshrl.u32 %v918, 16
        %v964 = vshll.u32 %v918, 16
        %v966 = vrot.slane %v964, 1
        %v967 = vor.u32 %v962, %v966
        %v969 = vshll.u32 %v942, 16
        %v971 = vrot.slane %v969, 1
        %v972 = vsel %vm264, %v967, %v971
        %v974 = vshrl.u32 %v919, 16
        %v976 = vshll.u32 %v919, 16
        %v978 = vrot.slane %v976, 1
        %v979 = vor.u32 %v974, %v978
        %v981 = vshll.u32 %v943, 16
        %v983 = vrot.slane %v981, 1
        %v984 = vsel %vm264, %v979, %v983
        %v986 = vshrl.u32 %v920, 16
        %v988 = vshll.u32 %v920, 16
        %v990 = vrot.slane %v988, 1
        %v991 = vor.u32 %v986, %v990
        %v993 = vshll.u32 %v944, 16
        %v995 = vrot.slane %v993, 1
        %v996 = vsel %vm264, %v991, %v995
        %v998 = vshrl.u32 %v921, 16
        %v1000 = vshll.u32 %v921, 16
        %v1002 = vrot.slane %v1000, 1
        %v1003 = vor.u32 %v998, %v1002
        %v1005 = vshll.u32 %v945, 16
        %v1007 = vrot.slane %v1005, 1
        %v1008 = vsel %vm264, %v1003, %v1007
        %v1010 = vshrl.u32 %v922, 16
        %v1012 = vshll.u32 %v922, 16
        %v1014 = vrot.slane %v1012, 1
        %v1015 = vor.u32 %v1010, %v1014
        %v1017 = vshll.u32 %v946, 16
        %v1019 = vrot.slane %v1017, 1
        %v1020 = vsel %vm264, %v1015, %v1019
        %v1022 = vshrl.u32 %v923, 16
        %v1024 = vshll.u32 %v923, 16
        %v1026 = vrot.slane %v1024, 1
        %v1027 = vor.u32 %v1022, %v1026
        %v1029 = vshll.u32 %v947, 16
        %v1031 = vrot.slane %v1029, 1
        %v1032 = vsel %vm264, %v1027, %v1031
        %v1034 = vshrl.u32 %v924, 16
        %v1036 = vshll.u32 %v924, 16
        %v1038 = vrot.slane %v1036, 1
        %v1039 = vor.u32 %v1034, %v1038
        %v1041 = vshll.u32 %v948, 16
        %v1043 = vrot.slane %v1041, 1
        %v1044 = vsel %vm264, %v1039, %v1043
        %1045 = vrot.lane.b32.xlu0 %v960, 8
        %v1046 = vpop.permute.xlu0 %1045
        %1047 = vrot.lane.b32.xlu0 %v972, 8
        %v1048 = vpop.permute.xlu0 %1047
        %1049 = vrot.lane.b32.xlu0 %v984, 8
        %v1050 = vpop.permute.xlu0 %1049
        %1051 = vrot.lane.b32.xlu0 %v996, 8
        %v1052 = vpop.permute.xlu0 %1051
        %1053 = vrot.lane.b32.xlu0 %v1008, 8
        %v1054 = vpop.permute.xlu0 %1053
        %1055 = vrot.lane.b32.xlu0 %v1020, 8
        %v1056 = vpop.permute.xlu0 %1055
        %1057 = vrot.lane.b32.xlu0 %v1032, 8
        %v1058 = vpop.permute.xlu0 %1057
        %1059 = vrot.lane.b32.xlu0 %v1044, 8
        %v1060 = vpop.permute.xlu0 %1059
        %v1061 = vrot.slane %v917, 1
        %v1062 = vrot.slane %v941, 1
        %v1063 = vsel %vm377, %v1061, %v1062
        %v1064 = vrot.slane %v918, 1
        %v1065 = vrot.slane %v942, 1
        %v1066 = vsel %vm377, %v1064, %v1065
        %v1067 = vrot.slane %v919, 1
        %v1068 = vrot.slane %v943, 1
        %v1069 = vsel %vm377, %v1067, %v1068
        %v1070 = vrot.slane %v920, 1
        %v1071 = vrot.slane %v944, 1
        %v1072 = vsel %vm377, %v1070, %v1071
        %v1073 = vrot.slane %v921, 1
        %v1074 = vrot.slane %v945, 1
        %v1075 = vsel %vm377, %v1073, %v1074
        %v1076 = vrot.slane %v922, 1
        %v1077 = vrot.slane %v946, 1
        %v1078 = vsel %vm377, %v1076, %v1077
        %v1079 = vrot.slane %v923, 1
        %v1080 = vrot.slane %v947, 1
        %v1081 = vsel %vm377, %v1079, %v1080
        %v1082 = vrot.slane %v924, 1
        %v1083 = vrot.slane %v948, 1
        %v1084 = vsel %vm377, %v1082, %v1083
        %1085 = vrot.lane.b32.xlu0 %v1063, 16
        %v1086 = vpop.permute.xlu0 %1085
        %1087 = vrot.lane.b32.xlu0 %v1066, 16
        %v1088 = vpop.permute.xlu0 %1087
        %1089 = vrot.lane.b32.xlu0 %v1069, 16
        %v1090 = vpop.permute.xlu0 %1089
        %1091 = vrot.lane.b32.xlu0 %v1072, 16
        %v1092 = vpop.permute.xlu0 %1091
        %1093 = vrot.lane.b32.xlu0 %v1075, 16
        %v1094 = vpop.permute.xlu0 %1093
        %1095 = vrot.lane.b32.xlu0 %v1078, 16
        %v1096 = vpop.permute.xlu0 %1095
        %1097 = vrot.lane.b32.xlu0 %v1081, 16
        %v1098 = vpop.permute.xlu0 %1097
        %1099 = vrot.lane.b32.xlu0 %v1084, 16
        %v1100 = vpop.permute.xlu0 %1099
        %v1103 = vunpack.c.l.b16 %v879
        %v1104 = vunpack.c.l.b16 %v880
        %v1105 = vpack.c.b16 %v1104, %v1103
        %1106 = vrot.lane.b32.xlu0 %v918, 24
        %v1107 = vpop.permute.xlu0 %1106
        %1108 = vrot.lane.b32.xlu0 %v919, 24
        %v1109 = vpop.permute.xlu0 %1108
        %1110 = vrot.lane.b32.xlu0 %v920, 24
        %v1111 = vpop.permute.xlu0 %1110
        %1112 = vrot.lane.b32.xlu0 %v921, 24
        %v1113 = vpop.permute.xlu0 %1112
        %1114 = vrot.lane.b32.xlu0 %v922, 24
        %v1115 = vpop.permute.xlu0 %1114
        %1116 = vrot.lane.b32.xlu0 %v923, 24
        %v1117 = vpop.permute.xlu0 %1116
        %1118 = vrot.lane.b32.xlu0 %v924, 24
        %v1119 = vpop.permute.xlu0 %1118
        %1120 = vrot.lane.b32.xlu0 %v1105, 24
        %v1121 = vpop.permute.xlu0 %1120
        %v1123 = vunpack.c.l.b16 %v881
        %v1124 = vpack.c.b16 %v1123, %v1123
        %v1126 = vshrl.u32 %v1105, 16
        %v1128 = vshll.u32 %v1105, 16
        %v1130 = vrot.slane %v1128, 1
        %v1131 = vor.u32 %v1126, %v1130
        %v1133 = vshll.u32 %v1124, 16
        %v1135 = vrot.slane %v1133, 1
        %v1136 = vsel %vm264, %v1131, %v1135
        %1137 = vrot.lane.b32.xlu0 %v972, 32
        %v1138 = vpop.permute.xlu0 %1137
        %1139 = vrot.lane.b32.xlu0 %v984, 32
        %v1140 = vpop.permute.xlu0 %1139
        %1141 = vrot.lane.b32.xlu0 %v996, 32
        %v1142 = vpop.permute.xlu0 %1141
        %1143 = vrot.lane.b32.xlu0 %v1008, 32
        %v1144 = vpop.permute.xlu0 %1143
        %1145 = vrot.lane.b32.xlu0 %v1020, 32
        %v1146 = vpop.permute.xlu0 %1145
        %1147 = vrot.lane.b32.xlu0 %v1032, 32
        %v1148 = vpop.permute.xlu0 %1147
        %1149 = vrot.lane.b32.xlu0 %v1044, 32
        %v1150 = vpop.permute.xlu0 %1149
        %1151 = vrot.lane.b32.xlu0 %v1136, 32
        %v1152 = vpop.permute.xlu0 %1151
        %v1153 = vrot.slane %v1105, 1
        %v1154 = vrot.slane %v1124, 1
        %v1155 = vsel %vm377, %v1153, %v1154
        %1156 = vrot.lane.b32.xlu0 %v1066, 40
        %v1157 = vpop.permute.xlu0 %1156
        %1158 = vrot.lane.b32.xlu0 %v1069, 40
        %v1159 = vpop.permute.xlu0 %1158
        %1160 = vrot.lane.b32.xlu0 %v1072, 40
        %v1161 = vpop.permute.xlu0 %1160
        %1162 = vrot.lane.b32.xlu0 %v1075, 40
        %v1163 = vpop.permute.xlu0 %1162
        %1164 = vrot.lane.b32.xlu0 %v1078, 40
        %v1165 = vpop.permute.xlu0 %1164
        %1166 = vrot.lane.b32.xlu0 %v1081, 40
        %v1167 = vpop.permute.xlu0 %1166
        %1168 = vrot.lane.b32.xlu0 %v1084, 40
        %v1169 = vpop.permute.xlu0 %1168
        %1170 = vrot.lane.b32.xlu0 %v1155, 40
        %v1171 = vpop.permute.xlu0 %1170
        %v1174 = vunpack.c.l.b16 %v882
        %v1175 = vunpack.c.l.b16 %v883
        %v1176 = vpack.c.b16 %v1175, %v1174
        %1177 = vrot.lane.b32.xlu0 %v919, 48
        %v1178 = vpop.permute.xlu0 %1177
        %1179 = vrot.lane.b32.xlu0 %v920, 48
        %v1180 = vpop.permute.xlu0 %1179
        %1181 = vrot.lane.b32.xlu0 %v921, 48
        %v1182 = vpop.permute.xlu0 %1181
        %1183 = vrot.lane.b32.xlu0 %v922, 48
        %v1184 = vpop.permute.xlu0 %1183
        %1185 = vrot.lane.b32.xlu0 %v923, 48
        %v1186 = vpop.permute.xlu0 %1185
        %1187 = vrot.lane.b32.xlu0 %v924, 48
        %v1188 = vpop.permute.xlu0 %1187
        %1189 = vrot.lane.b32.xlu0 %v1105, 48
        %v1190 = vpop.permute.xlu0 %1189
        %1191 = vrot.lane.b32.xlu0 %v1176, 48
        %v1192 = vpop.permute.xlu0 %1191
        %v1194 = vunpack.c.l.b16 %v884
        %v1195 = vpack.c.b16 %v1194, %v1194
        %v1197 = vshrl.u32 %v1176, 16
        %v1199 = vshll.u32 %v1176, 16
        %v1201 = vrot.slane %v1199, 1
        %v1202 = vor.u32 %v1197, %v1201
        %v1204 = vshll.u32 %v1195, 16
        %v1206 = vrot.slane %v1204, 1
        %v1207 = vsel %vm264, %v1202, %v1206
        %1208 = vrot.lane.b32.xlu0 %v984, 56
        %v1209 = vpop.permute.xlu0 %1208
        %1210 = vrot.lane.b32.xlu0 %v996, 56
        %v1211 = vpop.permute.xlu0 %1210
        %1212 = vrot.lane.b32.xlu0 %v1008, 56
        %v1213 = vpop.permute.xlu0 %1212
        %1214 = vrot.lane.b32.xlu0 %v1020, 56
        %v1215 = vpop.permute.xlu0 %1214
        %1216 = vrot.lane.b32.xlu0 %v1032, 56
        %v1217 = vpop.permute.xlu0 %1216
        %1218 = vrot.lane.b32.xlu0 %v1044, 56
        %v1219 = vpop.permute.xlu0 %1218
        %1220 = vrot.lane.b32.xlu0 %v1136, 56
        %v1221 = vpop.permute.xlu0 %1220
        %1222 = vrot.lane.b32.xlu0 %v1207, 56
        %v1223 = vpop.permute.xlu0 %1222
        %v1224 = vrot.slane %v1176, 1
        %v1225 = vrot.slane %v1195, 1
        %v1226 = vsel %vm377, %v1224, %v1225
        %1227 = vrot.lane.b32.xlu0 %v1069, 64
        %v1228 = vpop.permute.xlu0 %1227
        %1229 = vrot.lane.b32.xlu0 %v1072, 64
        %v1230 = vpop.permute.xlu0 %1229
        %1231 = vrot.lane.b32.xlu0 %v1075, 64
        %v1232 = vpop.permute.xlu0 %1231
        %1233 = vrot.lane.b32.xlu0 %v1078, 64
        %v1234 = vpop.permute.xlu0 %1233
        %1235 = vrot.lane.b32.xlu0 %v1081, 64
        %v1236 = vpop.permute.xlu0 %1235
        %1237 = vrot.lane.b32.xlu0 %v1084, 64
        %v1238 = vpop.permute.xlu0 %1237
        %1239 = vrot.lane.b32.xlu0 %v1155, 64
        %v1240 = vpop.permute.xlu0 %1239
        %1241 = vrot.lane.b32.xlu0 %v1226, 64
        %v1242 = vpop.permute.xlu0 %1241
        %v1244 = vsel %vm560, %v917, %v1046
        %v1246 = vsel %vm560, %v918, %v1048
        %v1248 = vsel %vm560, %v919, %v1050
        %v1250 = vsel %vm560, %v920, %v1052
        %v1252 = vsel %vm560, %v921, %v1054
        %v1254 = vsel %vm560, %v922, %v1056
        %v1256 = vsel %vm560, %v923, %v1058
        %v1258 = vsel %vm560, %v924, %v1060
        %v1260 = vsel %vm577, %v1244, %v1086
        %v1262 = vsel %vm577, %v1246, %v1088
        %v1264 = vsel %vm577, %v1248, %v1090
        %v1266 = vsel %vm577, %v1250, %v1092
        %v1268 = vsel %vm577, %v1252, %v1094
        %v1270 = vsel %vm577, %v1254, %v1096
        %v1272 = vsel %vm577, %v1256, %v1098
        %v1274 = vsel %vm577, %v1258, %v1100
        %v1276 = vsel %vm594, %v1260, %v1107
        %v1278 = vsel %vm594, %v1262, %v1109
        %v1280 = vsel %vm594, %v1264, %v1111
        %v1282 = vsel %vm594, %v1266, %v1113
        %v1284 = vsel %vm594, %v1268, %v1115
        %v1286 = vsel %vm594, %v1270, %v1117
        %v1288 = vsel %vm594, %v1272, %v1119
        %v1290 = vsel %vm594, %v1274, %v1121
        %v1292 = vsel %vm611, %v1276, %v1138
        %v1294 = vsel %vm611, %v1278, %v1140
        %v1296 = vsel %vm611, %v1280, %v1142
        %v1298 = vsel %vm611, %v1282, %v1144
        %v1300 = vsel %vm611, %v1284, %v1146
        %v1302 = vsel %vm611, %v1286, %v1148
        %v1304 = vsel %vm611, %v1288, %v1150
        %v1306 = vsel %vm611, %v1290, %v1152
        %v1308 = vsel %vm628, %v1292, %v1157
        %v1310 = vsel %vm628, %v1294, %v1159
        %v1312 = vsel %vm628, %v1296, %v1161
        %v1314 = vsel %vm628, %v1298, %v1163
        %v1316 = vsel %vm628, %v1300, %v1165
        %v1318 = vsel %vm628, %v1302, %v1167
        %v1320 = vsel %vm628, %v1304, %v1169
        %v1322 = vsel %vm628, %v1306, %v1171
        %v1324 = vsel %vm645, %v1308, %v1178
        %v1326 = vsel %vm645, %v1310, %v1180
        %v1328 = vsel %vm645, %v1312, %v1182
        %v1330 = vsel %vm645, %v1314, %v1184
        %v1332 = vsel %vm645, %v1316, %v1186
        %v1334 = vsel %vm645, %v1318, %v1188
        %v1336 = vsel %vm645, %v1320, %v1190
        %v1338 = vsel %vm645, %v1322, %v1192
        %v1340 = vsel %vm662, %v1324, %v1209
        %v1342 = vsel %vm662, %v1326, %v1211
        %v1344 = vsel %vm662, %v1328, %v1213
        %v1346 = vsel %vm662, %v1330, %v1215
        %v1348 = vsel %vm662, %v1332, %v1217
        %v1350 = vsel %vm662, %v1334, %v1219
        %v1352 = vsel %vm662, %v1336, %v1221
        %v1354 = vsel %vm662, %v1338, %v1223
        %v1356 = vsel %vm679, %v1340, %v1228
        %v1358 = vsel %vm679, %v1342, %v1230
        %v1360 = vsel %vm679, %v1344, %v1232
        %v1362 = vsel %vm679, %v1346, %v1234
        %v1364 = vsel %vm679, %v1348, %v1236
        %v1366 = vsel %vm679, %v1350, %v1238
        %v1368 = vsel %vm679, %v1352, %v1240
        %v1370 = vsel %vm679, %v1354, %v1242
        %v1371 = vld [vmem:[%s1] sm:$0xf]
        %v1372 = vld [vmem:[%s1 + $0x4] sm:$0xf]
        %v1373 = vld [vmem:[%s1 + $0x8] sm:$0xf]
        %v1374 = vld [vmem:[%s1 + $0xc] sm:$0xf]
        %v1375 = vld [vmem:[%s1 + $0x10] sm:$0xf]
        %v1376 = vld [vmem:[%s1 + $0x14] sm:$0xf]
        %v1377 = vld [vmem:[%s1 + $0x18] sm:$0xf]
        %v1378 = vld [vmem:[%s1 + $0x1c] sm:$0xf]
        %v1379 = vld [vmem:[%s1 + $0x20] sm:$0xf]
        %v1380 = vld [vmem:[%s2] sm:$0x1]
        %v1382 = vperm.slane %v1380, 0
        %v1393 = vunpack.c.l.b16 %v1371
        %v1394 = vunpack.c.l.b16 %v1372
        %v1395 = vunpack.c.l.b16 %v1373
        %v1396 = vunpack.c.l.b16 %v1374
        %v1397 = vunpack.c.l.b16 %v1375
        %v1398 = vunpack.c.l.b16 %v1376
        %v1399 = vunpack.c.l.b16 %v1377
        %v1400 = vunpack.c.l.b16 %v1378
        %v1401 = vunpack.c.l.b16 %v1379
        %v1402 = vpack.c.b16 %v1394, %v1393
        %v1403 = vpack.c.b16 %v1396, %v1395
        %v1404 = vpack.c.b16 %v1398, %v1397
        %v1405 = vpack.c.b16 %v1400, %v1399
        %v1406 = vpack.c.b16 %v1401, %v1401
        %v1411 = vsel %vm736, %v1356, 0
        %v1413 = vsel %vm736, %v1358, 0
        %v1415 = vsel %vm736, %v1360, 0
        %v1417 = vsel %vm736, %v1362, 0
        %v1419 = vsel %vm736, %v1364, 0
        %v1421 = vsel %vm736, %v1366, 0
        %v1423 = vsel %vm736, %v1368, 0
        %v1425 = vsel %vm736, %v1370, 0
        %v1428 = vsel %vm753, %v1406, 0
        %1430 = vmatpush.bf16.msra.mxu0 0
        %1431 = vmatpush.bf16.msra.mxu0 0
        %1432 = vmatpush.bf16.msra.mxu0 0
        %1433 = vmatpush.bf16.msra.mxu0 %v1428
        %1434 = vmatpush.bf16.msra.mxu0 %v1405
        %1435 = vmatpush.bf16.msra.mxu0 %v1404
        %1436 = vmatpush.bf16.msra.mxu0 %v1403
        %1437 = vmatpush.bf16.msra.mxu0 %v1402
        %1438 = vmatmul.bf16.gmra.mxu0 %v1411
        %v1439 = vpop.f32.mrf.mxu0
        %v1440 = vadd.f32 %v1382, %v1439
        %v1441 = vpop.f32.mrf.mxu0
        %v1442 = vadd.f32 %v1382, %v1441
        %1443 = vmatmul.bf16.gmra.mxu0 %v1413
        %v1444 = vpop.f32.mrf.mxu0
        %v1445 = vadd.f32 %v1382, %v1444
        %v1446 = vpop.f32.mrf.mxu0
        %v1447 = vadd.f32 %v1382, %v1446
        %1448 = vmatmul.bf16.gmra.mxu0 %v1415
        %v1449 = vpop.f32.mrf.mxu0
        %v1450 = vadd.f32 %v1382, %v1449
        %v1451 = vpop.f32.mrf.mxu0
        %v1452 = vadd.f32 %v1382, %v1451
        %1453 = vmatmul.bf16.gmra.mxu0 %v1417
        %v1454 = vpop.f32.mrf.mxu0
        %v1455 = vadd.f32 %v1382, %v1454
        %v1456 = vpop.f32.mrf.mxu0
        %v1457 = vadd.f32 %v1382, %v1456
        %1458 = vmatmul.bf16.gmra.mxu0 %v1419
        %v1459 = vpop.f32.mrf.mxu0
        %v1460 = vadd.f32 %v1382, %v1459
        %v1461 = vpop.f32.mrf.mxu0
        %v1462 = vadd.f32 %v1382, %v1461
        %1463 = vmatmul.bf16.gmra.mxu0 %v1421
        %v1464 = vpop.f32.mrf.mxu0
        %v1465 = vadd.f32 %v1382, %v1464
        %v1466 = vpop.f32.mrf.mxu0
        %v1467 = vadd.f32 %v1382, %v1466
        %1468 = vmatmul.bf16.gmra.mxu0 %v1423
        %v1469 = vpop.f32.mrf.mxu0
        %v1470 = vadd.f32 %v1382, %v1469
        %v1471 = vpop.f32.mrf.mxu0
        %v1472 = vadd.f32 %v1382, %v1471
        %1473 = vmatmul.bf16.gmra.mxu0 %v1425
        %v1474 = vpop.f32.mrf.mxu0
        %v1475 = vadd.f32 %v1382, %v1474
        %v1476 = vpop.f32.mrf.mxu0
        %v1477 = vadd.f32 %v1382, %v1476
        %1478 = vdwg.mxu0
        %v1479 = vmax.f32 %v1440, 0.0
        %v1480 = vmax.f32 %v1442, 0.0
        %v1481 = vmax.f32 %v1445, 0.0
        %v1482 = vmax.f32 %v1447, 0.0
        %v1483 = vmax.f32 %v1450, 0.0
        %v1484 = vmax.f32 %v1452, 0.0
        %v1485 = vmax.f32 %v1455, 0.0
        %v1486 = vmax.f32 %v1457, 0.0
        %v1487 = vmax.f32 %v1460, 0.0
        %v1488 = vmax.f32 %v1462, 0.0
        %v1489 = vmax.f32 %v1465, 0.0
        %v1490 = vmax.f32 %v1467, 0.0
        %v1491 = vmax.f32 %v1470, 0.0
        %v1492 = vmax.f32 %v1472, 0.0
        %v1493 = vmax.f32 %v1475, 0.0
        %v1494 = vmax.f32 %v1477, 0.0
        %v1495 = vpack.c.bf16 %v1479, %v1479
        %v1496 = vpack.c.bf16 %v1480, %v1480
        %v1497 = vpack.c.bf16 %v1481, %v1481
        %v1498 = vpack.c.bf16 %v1482, %v1482
        %v1499 = vpack.c.bf16 %v1483, %v1483
        %v1500 = vpack.c.bf16 %v1484, %v1484
        %v1501 = vpack.c.bf16 %v1485, %v1485
        %v1502 = vpack.c.bf16 %v1486, %v1486
        %v1503 = vpack.c.bf16 %v1487, %v1487
        %v1504 = vpack.c.bf16 %v1488, %v1488
        %v1505 = vpack.c.bf16 %v1489, %v1489
        %v1506 = vpack.c.bf16 %v1490, %v1490
        %v1507 = vpack.c.bf16 %v1491, %v1491
        %v1508 = vpack.c.bf16 %v1492, %v1492
        %v1509 = vpack.c.bf16 %v1493, %v1493
        %v1510 = vpack.c.bf16 %v1494, %v1494
        %s1511 = scalar_lea.vmem %s163, 64 [#allocation2]
        %1512 = vst [vmem:[%s1511] sm:$0xf] %v1495
        %1513 = vst [vmem:[%s1511 + $0x4] sm:$0xf] %v1496
        %1514 = vst [vmem:[%s1511 + $0x8] sm:$0xf] %v1497
        %1515 = vst [vmem:[%s1511 + $0xc] sm:$0xf] %v1498
        %1516 = vst [vmem:[%s1511 + $0x10] sm:$0xf] %v1499
        %1517 = vst [vmem:[%s1511 + $0x14] sm:$0xf] %v1500
        %1518 = vst [vmem:[%s1511 + $0x18] sm:$0xf] %v1501
        %1519 = vst [vmem:[%s1511 + $0x1c] sm:$0xf] %v1502
        %1520 = vst [vmem:[%s1511 + $0x20] sm:$0xf] %v1503
        %1521 = vst [vmem:[%s1511 + $0x24] sm:$0xf] %v1504
        %1522 = vst [vmem:[%s1511 + $0x28] sm:$0xf] %v1505
        %1523 = vst [vmem:[%s1511 + $0x2c] sm:$0xf] %v1506
        %1524 = vst [vmem:[%s1511 + $0x30] sm:$0xf] %v1507
        %1525 = vst [vmem:[%s1511 + $0x34] sm:$0xf] %v1508
        %1526 = vst [vmem:[%s1511 + $0x38] sm:$0xf] %v1509
        %1527 = vst [vmem:[%s1511 + $0x3c] sm:$0xf] %v1510
        %s1528 = sand.u32 %s93, 1
        %s1529 = scalar_lea.sflag [#allocation3], %s1528
        %s1530 = sand.u32 %s93, 1
        %s1531 = smul.addr %s1530, 128
        %s1532 = scalar_lea.vmem [#allocation2], %s1531
        // Predicated region
        $region33: #{tpu_custom_call.1} parent=31 // pred_check
          %p1533 = pneg %p103
        $region34: #{tpu_custom_call.1} parent=31 // pred_check_branch
          %1535 = sbr.rel (%p1533) target = $region36
        $region35: #{tpu_custom_call.1} parent=31 // pred_region
          %1537 = vsyncadd %s1529, 0
          %s1538 = smul.addr %s17, 32
          %s1539 = smul.addr %s1538, 4
          %s1540 = scalar_lea.hbm %s3, %s1539
          %s1541 = sshll.u32 %s1532, 4
          %s1542 = int_to_ptr.vmem [resolvable:$true] %s1541
          %s1543 = sshll.u32 %s1540, 4
          %s1544 = int_to_ptr.hbm [resolvable:$true] %s1543
          %1549 = dma.vmem_to_hbm [thread:$0]  %s1542, 2048, %s1544, %s1529, 64, 64, 4
        $region36: #{tpu_custom_call.1} parent=31 // pred_fallthru
          _
      $region32: #{tpu_custom_call.1} parent=5 // pred_fallthru
        _
      %p1550 = scmp.le.s32.totalorder 2, %s12
      // Predicated region
      $region37: #{tpu_custom_call.1} parent=5 // pred_check
        %p1551 = pneg %p1550
      $region38: #{tpu_custom_call.1} parent=5 // pred_check_branch
        %1553 = sbr.rel (%p1551) target = $region40
      $region39: #{tpu_custom_call.1} parent=5 // pred_region
        %s1554 = ssub.s32 %s12, 2
        // Predicated region
        $region41: #{tpu_custom_call.1} parent=39 // pred_check
          %p1555 = pneg %p109
        $region42: #{tpu_custom_call.1} parent=39 // pred_check_branch
          %1557 = sbr.rel (%p1555) target = $region44
        $region43: #{tpu_custom_call.1} parent=39 // pred_region
          %s1558 = sand.u32 %s94, 1
          %s1559 = scalar_lea.sflag [#allocation3], %s1558
          %s1560 = sand.u32 %s94, 1
          %s1561 = smul.addr %s1560, 128
          %s1562 = scalar_lea.vmem [#allocation2], %s1561
          %1564 = dma.done %s1559, 2048
        $region44: #{tpu_custom_call.1} parent=39 // pred_fallthru
          _
      $region40: #{tpu_custom_call.1} parent=5 // pred_fallthru
        _
    $region6: #{tpu_custom_call.1} parent=1 // loop_footer
      %s16 = sadd.s32 1, %s12
    $region7: #{tpu_custom_call.1} parent=1 // loop_footer_branch
      %11 = sbr.rel target = $region3
    $region8: #{tpu_custom_call.1} parent=1 // loop_exit
      _
    %1565 = vsyncpa [#allocation3], 1
    %s1566 = scalar_lea.sflag [#allocation3], 1
    %1567 = vsyncpa %s1566, 1

</llo_original>
